<compile_context>
chip_gen: v7x
topology: tpu7x:2x2x1
jax: 0.10.0
libtpu: 0.0.40
codegen_flags: <defaults>
</compile_context>

<pallas_src>
import functools

import jax
import jax.numpy as jnp
from jax.experimental import pallas as pl
from jax.experimental.pallas import tpu as pltpu


def attention_kernel(x_ref, gamma_ref, beta_ref, wq_ref, wk_ref, wv_ref,
                     wo_ref, bo_ref, o_ref, *, heads, dim_head, scale, eps):
    # ---- LayerNorm(dim), fp32 ----
    x = x_ref[0].astype(jnp.float32)                      # (N, D)
    gamma = gamma_ref[...]                                # (1, D) -- read once
    beta = beta_ref[...]
    bo = bo_ref[...]

    mean = jnp.mean(x, axis=-1, keepdims=True)
    var = jnp.mean(jnp.square(x - mean), axis=-1, keepdims=True)
    xn = (x - mean) * jax.lax.rsqrt(var + eps)
    xn = xn * gamma + beta                                # (N, D)

    n, d = xn.shape
    # Broadcast the normalized activations across heads ONCE (bf16 MXU operand).
    xb = jnp.broadcast_to(xn.astype(jnp.bfloat16)[None], (heads, n, d))

    # ---- q / k / v projections: head-batched MXU contractions ----
    q = jnp.einsum('hnd,hdk->hnk', xb, wq_ref[...],
                   preferred_element_type=jnp.float32)    # (H, N, dh) f32
    q = (q * scale).astype(jnp.bfloat16)                  # fold scale into q
    k = jnp.einsum('hnd,hdk->hnk', xb, wk_ref[...],
                   preferred_element_type=jnp.float32).astype(jnp.bfloat16)
    v = jnp.einsum('hnd,hdk->hnk', xb, wv_ref[...],
                   preferred_element_type=jnp.float32).astype(jnp.bfloat16)

    # ---- scaled dot-product attention, all heads in one batched contraction ----
    s = jnp.einsum('hid,hjd->hij', q, k,
                   preferred_element_type=jnp.float32)    # (H, N, N) f32
    m = jnp.max(s, axis=-1, keepdims=True)
    e = jnp.exp(s - m)
    l = jnp.sum(e, axis=-1, keepdims=True)
    attn = (e * pl.reciprocal(l, approx=True)).astype(jnp.bfloat16)
    # dropout(p=0.0) is identity

    oh = jnp.einsum('hij,hjd->hid', attn, v,
                    preferred_element_type=jnp.float32).astype(jnp.bfloat16)

    # ---- output projection: per-head matmul then sum over heads == concat @ Wo ----
    y = jnp.einsum('hnk,hkD->hnD', oh, wo_ref[...],
                   preferred_element_type=jnp.float32)    # (H, N, D) f32
    out = jnp.sum(y, axis=0) + bo                          # (N, D)

    o_ref[0] = out.astype(o_ref.dtype)


def attention_forward(x, params, *, heads, dim_head, eps=1e-5):
    """x: (B, N, D) float32. params: gamma, beta, wq (D,inner), wkv (D,2*inner),
    wo (inner,D), bo (D,)."""
    B, N, D = x.shape
    inner = heads * dim_head
    scale = dim_head ** -0.5

    gamma = params["gamma"].reshape(1, D).astype(jnp.float32)
    beta = params["beta"].reshape(1, D).astype(jnp.float32)
    bo = params["bo"].reshape(1, D).astype(jnp.float32)

    # One-time weight re-layout OUTSIDE the kernel: per-head leading axis, bf16.
    wq_h = params["wq"].reshape(D, heads, dim_head).transpose(1, 0, 2).astype(jnp.bfloat16)
    wk = params["wkv"][:, :inner]
    wv = params["wkv"][:, inner:]
    wk_h = wk.reshape(D, heads, dim_head).transpose(1, 0, 2).astype(jnp.bfloat16)
    wv_h = wv.reshape(D, heads, dim_head).transpose(1, 0, 2).astype(jnp.bfloat16)
    wo_h = params["wo"].reshape(heads, dim_head, D).astype(jnp.bfloat16)

    kernel = functools.partial(
        attention_kernel, heads=heads, dim_head=dim_head, scale=scale, eps=eps)

    return pl.pallas_call(
        kernel,
        out_shape=jax.ShapeDtypeStruct((B, N, D), x.dtype),
        grid_spec=pltpu.PrefetchScalarGridSpec(
            num_scalar_prefetch=0,
            grid=(B,),
            in_specs=[
                pl.BlockSpec((1, N, D), lambda b: (b, 0, 0)),             # x
                pl.BlockSpec((1, D), lambda b: (0, 0)),                   # gamma
                pl.BlockSpec((1, D), lambda b: (0, 0)),                   # beta
                pl.BlockSpec((heads, D, dim_head), lambda b: (0, 0, 0)),  # wq (per-head)
                pl.BlockSpec((heads, D, dim_head), lambda b: (0, 0, 0)),  # wk (per-head)
                pl.BlockSpec((heads, D, dim_head), lambda b: (0, 0, 0)),  # wv (per-head)
                pl.BlockSpec((heads, dim_head, D), lambda b: (0, 0, 0)),  # wo (per-head)
                pl.BlockSpec((1, D), lambda b: (0, 0)),                   # bo
            ],
            out_specs=pl.BlockSpec((1, N, D), lambda b: (b, 0, 0)),
        ),
        compiler_params=pltpu.CompilerParams(
            dimension_semantics=("parallel",)),
    )(x, gamma, beta, wq_h, wk_h, wv_h, wo_h, bo)


def attention_reference(x, params, *, heads, dim_head, eps=1e-5):
    """Pure-JAX fp32 reference mirroring the PyTorch forward."""
    B, N, D = x.shape
    inner = heads * dim_head
    scale = dim_head ** -0.5
    mean = jnp.mean(x, axis=-1, keepdims=True)
    var = jnp.mean((x - mean) ** 2, axis=-1, keepdims=True)
    xn = (x - mean) / jnp.sqrt(var + eps)
    xn = xn * params["gamma"] + params["beta"]
    q = xn @ params["wq"]
    kv = xn @ params["wkv"]
    k, v = kv[..., :inner], kv[..., inner:]

    def split_heads(t):
        return t.reshape(B, N, heads, dim_head).transpose(0, 2, 1, 3)

    q, k, v = map(split_heads, (q, k, v))
    dots = jnp.einsum("bhid,bhjd->bhij", q, k) * scale
    attn = jax.nn.softmax(dots, axis=-1)
    out = jnp.einsum("bhij,bhjd->bhid", attn, v)
    out = out.transpose(0, 2, 1, 3).reshape(B, N, inner)
    return out @ params["wo"] + params["bo"]


if __name__ == "__main__":
    # Small shapes consistent with the module (dim=32, heads=4, dim_head=16)
    B, N, D = 2, 8, 32
    heads, dim_head = 4, 16
    inner = heads * dim_head

    key = jax.random.PRNGKey(0)
    kx, kg, kb, kq, kkv, kwo, kbo = jax.random.split(key, 7)

    x = jax.random.normal(kx, (B, N, D), dtype=jnp.float32)

    # Deterministic synthetic parameters, stored as (in, out) (== PyTorch W.T)
    params = {
        "gamma": jax.random.normal(kg, (D,), dtype=jnp.float32) * 0.1 + 1.0,
        "beta": jax.random.normal(kb, (D,), dtype=jnp.float32) * 0.1,
        "wq": jax.random.normal(kq, (D, inner), dtype=jnp.float32) * (D ** -0.5),
        "wkv": jax.random.normal(kkv, (D, 2 * inner), dtype=jnp.float32) * (D ** -0.5),
        "wo": jax.random.normal(kwo, (inner, D), dtype=jnp.float32) * (inner ** -0.5),
        "bo": jax.random.normal(kbo, (D,), dtype=jnp.float32) * 0.1,
    }

    out = attention_forward(x, params, heads=heads, dim_head=dim_head)
    out = jax.block_until_ready(out)

    ref = attention_reference(x, params, heads=heads, dim_head=dim_head)
    assert out.shape == (B, N, D)
    # bf16 MXU operands + approx reciprocal -> looser tolerance than pure fp32
    assert jnp.allclose(out, ref, atol=5e-2, rtol=5e-2), "mismatch vs reference"

    print("KERNEL_OK")
</pallas_src>

<mosaic_0001>
module attributes {stable_mosaic.version = 11 : i64} {
  func.func @attention_kernel(%arg0: i32, %arg1: memref<1x8x32xf32, #tpu.memory_space<vmem>>, %arg2: memref<1x32xf32, #tpu.memory_space<vmem>>, %arg3: memref<1x32xf32, #tpu.memory_space<vmem>>, %arg4: memref<4x32x16xbf16, #tpu.memory_space<vmem>>, %arg5: memref<4x32x16xbf16, #tpu.memory_space<vmem>>, %arg6: memref<4x32x16xbf16, #tpu.memory_space<vmem>>, %arg7: memref<4x16x32xbf16, #tpu.memory_space<vmem>>, %arg8: memref<1x32xf32, #tpu.memory_space<vmem>>, %arg9: memref<1x8x32xf32, #tpu.memory_space<vmem>>) attributes {dimension_semantics = [#tpu.dimension_semantics<parallel>], iteration_bounds = array<i64: 2>, scalar_prefetch = 0 : i64, scratch_operands = 0 : i64, tpu.core_type = #tpu.core_type<tc>, window_params = [{transform_indices = @transform_0, window_bounds = array<i64: 1, 8, 32>}, {pipeline_mode = #tpu.pipeline_mode<synchronous>, transform_indices = @transform_1, window_bounds = array<i64: 1, 32>}, {pipeline_mode = #tpu.pipeline_mode<synchronous>, transform_indices = @transform_2, window_bounds = array<i64: 1, 32>}, {pipeline_mode = #tpu.pipeline_mode<synchronous>, transform_indices = @transform_3, window_bounds = array<i64: 4, 32, 16>}, {pipeline_mode = #tpu.pipeline_mode<synchronous>, transform_indices = @transform_4, window_bounds = array<i64: 4, 32, 16>}, {pipeline_mode = #tpu.pipeline_mode<synchronous>, transform_indices = @transform_5, window_bounds = array<i64: 4, 32, 16>}, {pipeline_mode = #tpu.pipeline_mode<synchronous>, transform_indices = @transform_6, window_bounds = array<i64: 4, 16, 32>}, {pipeline_mode = #tpu.pipeline_mode<synchronous>, transform_indices = @transform_7, window_bounds = array<i64: 1, 32>}, {transform_indices = @transform_8, window_bounds = array<i64: 1, 8, 32>}]} {
    %c0 = arith.constant 0 : index
    %c0_0 = arith.constant 0 : index
    %c0_1 = arith.constant 0 : index
    %0 = vector.load %arg1[%c0, %c0_0, %c0_1] : memref<1x8x32xf32, #tpu.memory_space<vmem>>, vector<1x8x32xf32>
    %1 = vector.shape_cast %0 : vector<1x8x32xf32> to vector<8x32xf32>
    %c0_2 = arith.constant 0 : index
    %c0_3 = arith.constant 0 : index
    %2 = vector.load %arg2[%c0_2, %c0_3] : memref<1x32xf32, #tpu.memory_space<vmem>>, vector<1x32xf32>
    %c0_4 = arith.constant 0 : index
    %c0_5 = arith.constant 0 : index
    %3 = vector.load %arg3[%c0_4, %c0_5] : memref<1x32xf32, #tpu.memory_space<vmem>>, vector<1x32xf32>
    %c0_6 = arith.constant 0 : index
    %c0_7 = arith.constant 0 : index
    %4 = vector.load %arg8[%c0_6, %c0_7] : memref<1x32xf32, #tpu.memory_space<vmem>>, vector<1x32xf32>
    %cst = arith.constant dense<0.000000e+00> : vector<8xf32>
    %5 = vector.multi_reduction <add>, %1, %cst [1] : vector<8x32xf32> to vector<8xf32>
    %6 = vector.shape_cast %5 : vector<8xf32> to vector<8x1xf32>
    %cst_8 = arith.constant 3.200000e+01 : f32
    %7 = vector.broadcast %cst_8 : f32 to vector<8x1xf32>
    %8 = arith.divf %6, %7 : vector<8x1xf32>
    %9 = vector.broadcast %8 : vector<8x1xf32> to vector<8x32xf32>
    %10 = arith.subf %1, %9 : vector<8x32xf32>
    %11 = arith.mulf %10, %10 : vector<8x32xf32>
    %cst_9 = arith.constant dense<0.000000e+00> : vector<8xf32>
    %12 = vector.multi_reduction <add>, %11, %cst_9 [1] : vector<8x32xf32> to vector<8xf32>
    %13 = vector.shape_cast %12 : vector<8xf32> to vector<8x1xf32>
    %cst_10 = arith.constant 3.200000e+01 : f32
    %14 = vector.broadcast %cst_10 : f32 to vector<8x1xf32>
    %15 = arith.divf %13, %14 : vector<8x1xf32>
    %16 = vector.broadcast %8 : vector<8x1xf32> to vector<8x32xf32>
    %17 = arith.subf %1, %16 : vector<8x32xf32>
    %cst_11 = arith.constant 9.99999974E-6 : f32
    %18 = vector.broadcast %cst_11 : f32 to vector<8x1xf32>
    %19 = arith.addf %15, %18 : vector<8x1xf32>
    %20 = math.rsqrt %19 : vector<8x1xf32>
    %21 = vector.broadcast %20 : vector<8x1xf32> to vector<8x32xf32>
    %22 = arith.mulf %17, %21 : vector<8x32xf32>
    %23 = vector.broadcast %2 : vector<1x32xf32> to vector<8x32xf32>
    %24 = arith.mulf %22, %23 : vector<8x32xf32>
    %25 = vector.broadcast %3 : vector<1x32xf32> to vector<8x32xf32>
    %26 = arith.addf %24, %25 : vector<8x32xf32>
    %27 = arith.truncf %26 : vector<8x32xf32> to vector<8x32xbf16>
    %28 = vector.shape_cast %27 : vector<8x32xbf16> to vector<1x8x32xbf16>
    %29 = vector.shape_cast %28 : vector<1x8x32xbf16> to vector<1x8x32xbf16>
    %30 = vector.broadcast %29 : vector<1x8x32xbf16> to vector<4x8x32xbf16>
    %c0_12 = arith.constant 0 : index
    %c0_13 = arith.constant 0 : index
    %c0_14 = arith.constant 0 : index
    %31 = vector.load %arg4[%c0_12, %c0_13, %c0_14] : memref<4x32x16xbf16, #tpu.memory_space<vmem>>, vector<4x32x16xbf16>
    "tpu.trace_start"() <{level = 10 : i32, message = "hnd,hdk->hnk"}> : () -> ()
    %cst_15 = arith.constant dense<0.000000e+00> : vector<4x8x16xf32>
    %32 = tpu.matmul %30, %31, %cst_15 {dimension_numbers = #tpu.dot_dimension_numbers<[2], [1], [1], [2], [0, 0, 0, 1, 1, 2], [0], [0]>} : vector<4x8x32xbf16>, vector<4x32x16xbf16>, vector<4x8x16xf32> -> vector<4x8x16xf32>
    "tpu.trace_stop"() : () -> ()
    %cst_16 = arith.constant 2.500000e-01 : f32
    %33 = vector.broadcast %cst_16 : f32 to vector<4x8x16xf32>
    %34 = arith.mulf %32, %33 : vector<4x8x16xf32>
    %35 = arith.truncf %34 : vector<4x8x16xf32> to vector<4x8x16xbf16>
    %c0_17 = arith.constant 0 : index
    %c0_18 = arith.constant 0 : index
    %c0_19 = arith.constant 0 : index
    %36 = vector.load %arg5[%c0_17, %c0_18, %c0_19] : memref<4x32x16xbf16, #tpu.memory_space<vmem>>, vector<4x32x16xbf16>
    "tpu.trace_start"() <{level = 10 : i32, message = "hnd,hdk->hnk"}> : () -> ()
    %cst_20 = arith.constant dense<0.000000e+00> : vector<4x8x16xf32>
    %37 = tpu.matmul %30, %36, %cst_20 {dimension_numbers = #tpu.dot_dimension_numbers<[2], [1], [1], [2], [0, 0, 0, 1, 1, 2], [0], [0]>} : vector<4x8x32xbf16>, vector<4x32x16xbf16>, vector<4x8x16xf32> -> vector<4x8x16xf32>
    "tpu.trace_stop"() : () -> ()
    %38 = arith.truncf %37 : vector<4x8x16xf32> to vector<4x8x16xbf16>
    %c0_21 = arith.constant 0 : index
    %c0_22 = arith.constant 0 : index
    %c0_23 = arith.constant 0 : index
    %39 = vector.load %arg6[%c0_21, %c0_22, %c0_23] : memref<4x32x16xbf16, #tpu.memory_space<vmem>>, vector<4x32x16xbf16>
    "tpu.trace_start"() <{level = 10 : i32, message = "hnd,hdk->hnk"}> : () -> ()
    %cst_24 = arith.constant dense<0.000000e+00> : vector<4x8x16xf32>
    %40 = tpu.matmul %30, %39, %cst_24 {dimension_numbers = #tpu.dot_dimension_numbers<[2], [1], [1], [2], [0, 0, 0, 1, 1, 2], [0], [0]>} : vector<4x8x32xbf16>, vector<4x32x16xbf16>, vector<4x8x16xf32> -> vector<4x8x16xf32>
    "tpu.trace_stop"() : () -> ()
    %41 = arith.truncf %40 : vector<4x8x16xf32> to vector<4x8x16xbf16>
    "tpu.trace_start"() <{level = 10 : i32, message = "hid,hjd->hij"}> : () -> ()
    %cst_25 = arith.constant dense<0.000000e+00> : vector<4x8x8xf32>
    %42 = tpu.matmul %35, %38, %cst_25 {dimension_numbers = #tpu.dot_dimension_numbers<[2], [2], [1], [1], [0, 0, 0, 1, 1, 1], [0], [0]>} : vector<4x8x16xbf16>, vector<4x8x16xbf16>, vector<4x8x8xf32> -> vector<4x8x8xf32>
    "tpu.trace_stop"() : () -> ()
    %cst_26 = arith.constant dense<0xFF800000> : vector<4x8xf32>
    %43 = vector.multi_reduction <maximumf>, %42, %cst_26 [2] : vector<4x8x8xf32> to vector<4x8xf32>
    %44 = vector.shape_cast %43 : vector<4x8xf32> to vector<4x8x1xf32>
    %45 = vector.broadcast %44 : vector<4x8x1xf32> to vector<4x8x8xf32>
    %46 = arith.subf %42, %45 : vector<4x8x8xf32>
    %47 = math.exp %46 : vector<4x8x8xf32>
    %cst_27 = arith.constant dense<0.000000e+00> : vector<4x8xf32>
    %48 = vector.multi_reduction <add>, %47, %cst_27 [2] : vector<4x8x8xf32> to vector<4x8xf32>
    %49 = vector.shape_cast %48 : vector<4x8xf32> to vector<4x8x1xf32>
    %50 = tpu.reciprocal %49 {approx = true} : vector<4x8x1xf32> -> vector<4x8x1xf32>
    %51 = vector.broadcast %50 : vector<4x8x1xf32> to vector<4x8x8xf32>
    %52 = arith.mulf %47, %51 : vector<4x8x8xf32>
    %53 = arith.truncf %52 : vector<4x8x8xf32> to vector<4x8x8xbf16>
    "tpu.trace_start"() <{level = 10 : i32, message = "hij,hjd->hid"}> : () -> ()
    %cst_28 = arith.constant dense<0.000000e+00> : vector<4x8x16xf32>
    %54 = tpu.matmul %53, %41, %cst_28 {dimension_numbers = #tpu.dot_dimension_numbers<[2], [1], [1], [2], [0, 0, 0, 1, 1, 2], [0], [0]>} : vector<4x8x8xbf16>, vector<4x8x16xbf16>, vector<4x8x16xf32> -> vector<4x8x16xf32>
    "tpu.trace_stop"() : () -> ()
    %55 = arith.truncf %54 : vector<4x8x16xf32> to vector<4x8x16xbf16>
    %c0_29 = arith.constant 0 : index
    %c0_30 = arith.constant 0 : index
    %c0_31 = arith.constant 0 : index
    %56 = vector.load %arg7[%c0_29, %c0_30, %c0_31] : memref<4x16x32xbf16, #tpu.memory_space<vmem>>, vector<4x16x32xbf16>
    "tpu.trace_start"() <{level = 10 : i32, message = "hnk,hkD->hnD"}> : () -> ()
    %cst_32 = arith.constant dense<0.000000e+00> : vector<4x8x32xf32>
    %57 = tpu.matmul %55, %56, %cst_32 {dimension_numbers = #tpu.dot_dimension_numbers<[2], [1], [1], [2], [0, 0, 0, 1, 1, 2], [0], [0]>} : vector<4x8x16xbf16>, vector<4x16x32xbf16>, vector<4x8x32xf32> -> vector<4x8x32xf32>
    "tpu.trace_stop"() : () -> ()
    %cst_33 = arith.constant dense<0.000000e+00> : vector<8x32xf32>
    %58 = vector.multi_reduction <add>, %57, %cst_33 [0] : vector<4x8x32xf32> to vector<8x32xf32>
    %59 = vector.broadcast %4 : vector<1x32xf32> to vector<8x32xf32>
    %60 = arith.addf %58, %59 : vector<8x32xf32>
    %c0_34 = arith.constant 0 : index
    %c0_35 = arith.constant 0 : index
    %c0_36 = arith.constant 0 : index
    %61 = vector.load %arg9[%c0_34, %c0_35, %c0_36] : memref<1x8x32xf32, #tpu.memory_space<vmem>>, vector<1x8x32xf32>
    %62 = vector.shape_cast %61 : vector<1x8x32xf32> to vector<8x32xf32>
    %63 = vector.shape_cast %60 : vector<8x32xf32> to vector<1x8x32xf32>
    tpu.vector_store %arg9[%c0_34, %c0_35, %c0_36], %63 {strides = array<i32>} : memref<1x8x32xf32, #tpu.memory_space<vmem>>, vector<1x8x32xf32>,
    return
  }
  func.func @transform_0(%arg0: i32) -> (i32, i32, i32) {
    %c0_i32 = arith.constant 0 : i32
    %c0_i32_0 = arith.constant 0 : i32
    %c0_i32_1 = arith.constant 0 : i32
    return %arg0, %c0_i32, %c0_i32_0 : i32, i32, i32
  }
  func.func @transform_1(%arg0: i32) -> (i32, i32) {
    %c0_i32 = arith.constant 0 : i32
    %c0_i32_0 = arith.constant 0 : i32
    %c0_i32_1 = arith.constant 0 : i32
    return %c0_i32, %c0_i32_0 : i32, i32
  }
  func.func @transform_2(%arg0: i32) -> (i32, i32) {
    %c0_i32 = arith.constant 0 : i32
    %c0_i32_0 = arith.constant 0 : i32
    %c0_i32_1 = arith.constant 0 : i32
    return %c0_i32, %c0_i32_0 : i32, i32
  }
  func.func @transform_3(%arg0: i32) -> (i32, i32, i32) {
    %c0_i32 = arith.constant 0 : i32
    %c0_i32_0 = arith.constant 0 : i32
    %c0_i32_1 = arith.constant 0 : i32
    %c0_i32_2 = arith.constant 0 : i32
    return %c0_i32, %c0_i32_0, %c0_i32_1 : i32, i32, i32
  }
  func.func @transform_4(%arg0: i32) -> (i32, i32, i32) {
    %c0_i32 = arith.constant 0 : i32
    %c0_i32_0 = arith.constant 0 : i32
    %c0_i32_1 = arith.constant 0 : i32
    %c0_i32_2 = arith.constant 0 : i32
    return %c0_i32, %c0_i32_0, %c0_i32_1 : i32, i32, i32
  }
  func.func @transform_5(%arg0: i32) -> (i32, i32, i32) {
    %c0_i32 = arith.constant 0 : i32
    %c0_i32_0 = arith.constant 0 : i32
    %c0_i32_1 = arith.constant 0 : i32
    %c0_i32_2 = arith.constant 0 : i32
    return %c0_i32, %c0_i32_0, %c0_i32_1 : i32, i32, i32
  }
  func.func @transform_6(%arg0: i32) -> (i32, i32, i32) {
    %c0_i32 = arith.constant 0 : i32
    %c0_i32_0 = arith.constant 0 : i32
    %c0_i32_1 = arith.constant 0 : i32
    %c0_i32_2 = arith.constant 0 : i32
    return %c0_i32, %c0_i32_0, %c0_i32_1 : i32, i32, i32
  }
  func.func @transform_7(%arg0: i32) -> (i32, i32) {
    %c0_i32 = arith.constant 0 : i32
    %c0_i32_0 = arith.constant 0 : i32
    %c0_i32_1 = arith.constant 0 : i32
    return %c0_i32, %c0_i32_0 : i32, i32
  }
  func.func @transform_8(%arg0: i32) -> (i32, i32, i32) {
    %c0_i32 = arith.constant 0 : i32
    %c0_i32_0 = arith.constant 0 : i32
    %c0_i32_1 = arith.constant 0 : i32
    return %arg0, %c0_i32, %c0_i32_0 : i32, i32, i32
  }
}

</mosaic_0001>

<llo_original>
// kernel: tpu_custom_call.1
$region0: #{tpu_custom_call.1}
  #allocation0 [shape = 'u32[]', space=smem, size = 0x4, offset = 0x4, fixed_abs, tag = 'smem constant byte address 0x4 - core index']
  #allocation1 [shape = 'u32[144,128]{1,0:T(1,128)}', space=vmem, size = 0x12000, scoped, tag = 'internal scratch']
  %s0 = inlined_call_operand.vmem [shape: f32[2,8,32], index: 0, kind: input, shape index: {}]
  %s1 = inlined_call_operand.vmem [shape: f32[1,32], index: 1, kind: input, shape index: {}]
  %s2 = inlined_call_operand.vmem [shape: f32[1,32], index: 2, kind: input, shape index: {}]
  %s3 = inlined_call_operand.vmem [shape: bf16[4,32,16], index: 3, kind: input, shape index: {}]
  %s4 = inlined_call_operand.vmem [shape: bf16[4,32,16], index: 4, kind: input, shape index: {}]
  %s5 = inlined_call_operand.vmem [shape: bf16[4,32,16], index: 5, kind: input, shape index: {}]
  %s6 = inlined_call_operand.vmem [shape: bf16[4,16,32], index: 6, kind: input, shape index: {}]
  %s7 = inlined_call_operand.vmem [shape: f32[1,32], index: 7, kind: input, shape index: {}]
  %s8 = inlined_call_operand.hbm [shape: f32[2,8,32], index: 8, kind: output, shape index: {}]
  %s9 = sld [smem:[#allocation0]]
  $region65: #{tpu_custom_call.1} parent=0
    _
  %s11 = ssub.s32 1, %s9
  %s12 = scalar_select 0, %s11, %s9
  $region1: #{tpu_custom_call.1} parent=0
    #allocation2 [shape = 'u8[8192]{0}', space=vmem, size = 0x2000, scoped, tag = 'output window, operand 0']
    #allocation3 [shape = 's32[2]{0}', space=sflag, size = 0x8, scoped, tag = 'scoped memory for tpu_custom_call.1']
    %13 = vsyncpa [#allocation3], 0
    %s14 = scalar_lea.sflag [#allocation3], 1
    %15 = vsyncpa %s14, 0
    loop: start=0, step=1, limit=4
    $region2: #{tpu_custom_call.1} parent=1 // loop_pre_header
      _
    $region3: #{tpu_custom_call.1} parent=1 // loop_header
      %s17 = sphi 0, %s21
      %p18 = scmp.ge.s32.totalorder %s17, 4
      %s27 = sphi 0, %s29
      %s30 = sphi 0, %s27
      %s31 = sphi 0, %s30
      %s47 = sphi 0, %s31
      %s51 = sphi 0, %s51
      %s53 = sphi 0, %s51
      %s54 = sphi 0, %s53
      %s68 = sphi 0, %s54
      %s72 = sphi 0, %s72
      %s74 = sphi 0, %s72
      %s75 = sphi 0, %s74
      %s89 = sphi 0, %s75
      %s93 = sphi 0, %s93
      %s95 = sphi 0, %s93
      %s96 = sphi 0, %s95
      %s110 = sphi 0, %s96
      %s114 = sphi 0, %s114
      %s116 = sphi 0, %s114
      %s117 = sphi 0, %s116
      %s131 = sphi 0, %s117
      %s135 = sphi 0, %s135
      %s137 = sphi 0, %s135
      %s138 = sphi 0, %s137
      %s152 = sphi 0, %s138
      %s156 = sphi 0, %s156
      %s158 = sphi 0, %s156
      %s159 = sphi 0, %s158
      %s173 = sphi 0, %s159
      %s177 = sphi 0, %s177
      %s179 = sphi 0, %s177
      %s180 = sphi 0, %s179
      %s194 = sphi 0, %s180
      %s200 = sphi 0, %s202
      %s203 = sphi 0, %s200
      %s204 = sphi 0, %s203
      %s220 = sphi 0, %s204
    $region4: #{tpu_custom_call.1} parent=1 // loop_header_branch
      %20 = sbr.rel (%p18) target = $region8
    $region5: #{tpu_custom_call.1} parent=1 // loop_body
      %s22 = ssub.s32 %s17, 1
      %s23 = ssub.s32 %s17, 2
      %s24 = sadd.s32 %s17, 1
      %s25 = ssub.s32 %s17, %s24
      %p26 = scmp.eq.s32.totalorder %s25, 0
      %s28 = sadd.s32 %s27, 1
      %s29 = scalar_select %p26, %s27, %s28
      %p32 = pneg %p26
      %p33 = scmp.eq.s32.totalorder %s17, 1
      %p34 = por %p32, %p33
      %p35 = scmp.ne.s32.totalorder %s27, %s30
      %p36 = scmp.eq.s32.totalorder %s17, 0
      %p37 = por %p35, %p36
      %p38 = scmp.ne.s32.totalorder %s27, %s30
      %p39 = scmp.eq.s32.totalorder %s22, 1
      %p40 = por %p38, %p39
      %p41 = scmp.ne.s32.totalorder %s30, %s31
      %p42 = scmp.eq.s32.totalorder %s22, 0
      %p43 = por %p41, %p42
      %p44 = scmp.ne.s32.totalorder %s30, %s31
      %p45 = scmp.eq.s32.totalorder %s23, 1
      %p46 = por %p44, %p45
      %p48 = scmp.ne.s32.totalorder %s31, %s47
      %p49 = scmp.eq.s32.totalorder %s23, 0
      %p50 = por %p48, %p49
      %s52 = sadd.s32 %s51, 1
      %p55 = scmp.eq.s32.totalorder %s17, 1
      %p56 = scmp.ne.s32.totalorder %s51, %s53
      %p57 = scmp.eq.s32.totalorder %s17, 0
      %p58 = por %p56, %p57
      %p59 = scmp.ne.s32.totalorder %s51, %s53
      %p60 = scmp.eq.s32.totalorder %s22, 1
      %p61 = por %p59, %p60
      %p62 = scmp.ne.s32.totalorder %s53, %s54
      %p63 = scmp.eq.s32.totalorder %s22, 0
      %p64 = por %p62, %p63
      %p65 = scmp.ne.s32.totalorder %s53, %s54
      %p66 = scmp.eq.s32.totalorder %s23, 1
      %p67 = por %p65, %p66
      %p69 = scmp.ne.s32.totalorder %s54, %s68
      %p70 = scmp.eq.s32.totalorder %s23, 0
      %p71 = por %p69, %p70
      %s73 = sadd.s32 %s72, 1
      %p76 = scmp.eq.s32.totalorder %s17, 1
      %p77 = scmp.ne.s32.totalorder %s72, %s74
      %p78 = scmp.eq.s32.totalorder %s17, 0
      %p79 = por %p77, %p78
      %p80 = scmp.ne.s32.totalorder %s72, %s74
      %p81 = scmp.eq.s32.totalorder %s22, 1
      %p82 = por %p80, %p81
      %p83 = scmp.ne.s32.totalorder %s74, %s75
      %p84 = scmp.eq.s32.totalorder %s22, 0
      %p85 = por %p83, %p84
      %p86 = scmp.ne.s32.totalorder %s74, %s75
      %p87 = scmp.eq.s32.totalorder %s23, 1
      %p88 = por %p86, %p87
      %p90 = scmp.ne.s32.totalorder %s75, %s89
      %p91 = scmp.eq.s32.totalorder %s23, 0
      %p92 = por %p90, %p91
      %s94 = sadd.s32 %s93, 1
      %p97 = scmp.eq.s32.totalorder %s17, 1
      %p98 = scmp.ne.s32.totalorder %s93, %s95
      %p99 = scmp.eq.s32.totalorder %s17, 0
      %p100 = por %p98, %p99
      %p101 = scmp.ne.s32.totalorder %s93, %s95
      %p102 = scmp.eq.s32.totalorder %s22, 1
      %p103 = por %p101, %p102
      %p104 = scmp.ne.s32.totalorder %s95, %s96
      %p105 = scmp.eq.s32.totalorder %s22, 0
      %p106 = por %p104, %p105
      %p107 = scmp.ne.s32.totalorder %s95, %s96
      %p108 = scmp.eq.s32.totalorder %s23, 1
      %p109 = por %p107, %p108
      %p111 = scmp.ne.s32.totalorder %s96, %s110
      %p112 = scmp.eq.s32.totalorder %s23, 0
      %p113 = por %p111, %p112
      %s115 = sadd.s32 %s114, 1
      %p118 = scmp.eq.s32.totalorder %s17, 1
      %p119 = scmp.ne.s32.totalorder %s114, %s116
      %p120 = scmp.eq.s32.totalorder %s17, 0
      %p121 = por %p119, %p120
      %p122 = scmp.ne.s32.totalorder %s114, %s116
      %p123 = scmp.eq.s32.totalorder %s22, 1
      %p124 = por %p122, %p123
      %p125 = scmp.ne.s32.totalorder %s116, %s117
      %p126 = scmp.eq.s32.totalorder %s22, 0
      %p127 = por %p125, %p126
      %p128 = scmp.ne.s32.totalorder %s116, %s117
      %p129 = scmp.eq.s32.totalorder %s23, 1
      %p130 = por %p128, %p129
      %p132 = scmp.ne.s32.totalorder %s117, %s131
      %p133 = scmp.eq.s32.totalorder %s23, 0
      %p134 = por %p132, %p133
      %s136 = sadd.s32 %s135, 1
      %p139 = scmp.eq.s32.totalorder %s17, 1
      %p140 = scmp.ne.s32.totalorder %s135, %s137
      %p141 = scmp.eq.s32.totalorder %s17, 0
      %p142 = por %p140, %p141
      %p143 = scmp.ne.s32.totalorder %s135, %s137
      %p144 = scmp.eq.s32.totalorder %s22, 1
      %p145 = por %p143, %p144
      %p146 = scmp.ne.s32.totalorder %s137, %s138
      %p147 = scmp.eq.s32.totalorder %s22, 0
      %p148 = por %p146, %p147
      %p149 = scmp.ne.s32.totalorder %s137, %s138
      %p150 = scmp.eq.s32.totalorder %s23, 1
      %p151 = por %p149, %p150
      %p153 = scmp.ne.s32.totalorder %s138, %s152
      %p154 = scmp.eq.s32.totalorder %s23, 0
      %p155 = por %p153, %p154
      %s157 = sadd.s32 %s156, 1
      %p160 = scmp.eq.s32.totalorder %s17, 1
      %p161 = scmp.ne.s32.totalorder %s156, %s158
      %p162 = scmp.eq.s32.totalorder %s17, 0
      %p163 = por %p161, %p162
      %p164 = scmp.ne.s32.totalorder %s156, %s158
      %p165 = scmp.eq.s32.totalorder %s22, 1
      %p166 = por %p164, %p165
      %p167 = scmp.ne.s32.totalorder %s158, %s159
      %p168 = scmp.eq.s32.totalorder %s22, 0
      %p169 = por %p167, %p168
      %p170 = scmp.ne.s32.totalorder %s158, %s159
      %p171 = scmp.eq.s32.totalorder %s23, 1
      %p172 = por %p170, %p171
      %p174 = scmp.ne.s32.totalorder %s159, %s173
      %p175 = scmp.eq.s32.totalorder %s23, 0
      %p176 = por %p174, %p175
      %s178 = sadd.s32 %s177, 1
      %p181 = scmp.eq.s32.totalorder %s17, 1
      %p182 = scmp.ne.s32.totalorder %s177, %s179
      %p183 = scmp.eq.s32.totalorder %s17, 0
      %p184 = por %p182, %p183
      %p185 = scmp.ne.s32.totalorder %s177, %s179
      %p186 = scmp.eq.s32.totalorder %s22, 1
      %p187 = por %p185, %p186
      %p188 = scmp.ne.s32.totalorder %s179, %s180
      %p189 = scmp.eq.s32.totalorder %s22, 0
      %p190 = por %p188, %p189
      %p191 = scmp.ne.s32.totalorder %s179, %s180
      %p192 = scmp.eq.s32.totalorder %s23, 1
      %p193 = por %p191, %p192
      %p195 = scmp.ne.s32.totalorder %s180, %s194
      %p196 = scmp.eq.s32.totalorder %s23, 0
      %p197 = por %p195, %p196
      %s198 = ssub.s32 %s17, %s24
      %p199 = scmp.eq.s32.totalorder %s198, 0
      %s201 = sadd.s32 %s200, 1
      %s202 = scalar_select %p199, %s200, %s201
      %p205 = pneg %p199
      %p206 = scmp.eq.s32.totalorder %s17, 1
      %p207 = por %p205, %p206
      %p208 = scmp.ne.s32.totalorder %s200, %s203
      %p209 = scmp.eq.s32.totalorder %s17, 0
      %p210 = por %p208, %p209
      %p211 = scmp.ne.s32.totalorder %s200, %s203
      %p212 = scmp.eq.s32.totalorder %s22, 1
      %p213 = por %p211, %p212
      %p214 = scmp.ne.s32.totalorder %s203, %s204
      %p215 = scmp.eq.s32.totalorder %s22, 0
      %p216 = por %p214, %p215
      %p217 = scmp.ne.s32.totalorder %s203, %s204
      %p218 = scmp.eq.s32.totalorder %s23, 1
      %p219 = por %p217, %p218
      %p221 = scmp.ne.s32.totalorder %s204, %s220
      %p222 = scmp.eq.s32.totalorder %s23, 0
      %p223 = por %p221, %p222
      %p224 = scmp.le.s32.totalorder 1, %s17
      %p225 = scmp.lt.s32.totalorder %s17, 3
      %p226 = pnand %p224, %p225
      %p227 = pneg %p226
      // Predicated region
      $region9: #{tpu_custom_call.1} parent=5 // pred_check
        _
      $region10: #{tpu_custom_call.1} parent=5 // pred_check_branch
        %229 = sbr.rel (%p226) target = $region12
      $region11: #{tpu_custom_call.1} parent=5 // pred_region
        %s230 = ssub.s32 %s17, 1
        // Predicated region
        $region13: #{tpu_custom_call.1} parent=11 // pred_check
          %p231 = pneg %p64
        $region14: #{tpu_custom_call.1} parent=11 // pred_check_branch
          %233 = sbr.rel (%p231) target = $region16
        $region15: #{tpu_custom_call.1} parent=11 // pred_region
          _
        $region16: #{tpu_custom_call.1} parent=11 // pred_fallthru
          _
        // Predicated region
        $region17: #{tpu_custom_call.1} parent=11 // pred_check
          %p234 = pneg %p85
        $region18: #{tpu_custom_call.1} parent=11 // pred_check_branch
          %236 = sbr.rel (%p234) target = $region20
        $region19: #{tpu_custom_call.1} parent=11 // pred_region
          _
        $region20: #{tpu_custom_call.1} parent=11 // pred_fallthru
          _
        // Predicated region
        $region21: #{tpu_custom_call.1} parent=11 // pred_check
          %p237 = pneg %p106
        $region22: #{tpu_custom_call.1} parent=11 // pred_check_branch
          %239 = sbr.rel (%p237) target = $region24
        $region23: #{tpu_custom_call.1} parent=11 // pred_region
          _
        $region24: #{tpu_custom_call.1} parent=11 // pred_fallthru
          _
        // Predicated region
        $region25: #{tpu_custom_call.1} parent=11 // pred_check
          %p240 = pneg %p127
        $region26: #{tpu_custom_call.1} parent=11 // pred_check_branch
          %242 = sbr.rel (%p240) target = $region28
        $region27: #{tpu_custom_call.1} parent=11 // pred_region
          _
        $region28: #{tpu_custom_call.1} parent=11 // pred_fallthru
          _
        // Predicated region
        $region29: #{tpu_custom_call.1} parent=11 // pred_check
          %p243 = pneg %p148
        $region30: #{tpu_custom_call.1} parent=11 // pred_check_branch
          %245 = sbr.rel (%p243) target = $region32
        $region31: #{tpu_custom_call.1} parent=11 // pred_region
          _
        $region32: #{tpu_custom_call.1} parent=11 // pred_fallthru
          _
        // Predicated region
        $region33: #{tpu_custom_call.1} parent=11 // pred_check
          %p246 = pneg %p169
        $region34: #{tpu_custom_call.1} parent=11 // pred_check_branch
          %248 = sbr.rel (%p246) target = $region36
        $region35: #{tpu_custom_call.1} parent=11 // pred_region
          _
        $region36: #{tpu_custom_call.1} parent=11 // pred_fallthru
          _
        // Predicated region
        $region37: #{tpu_custom_call.1} parent=11 // pred_check
          %p249 = pneg %p190
        $region38: #{tpu_custom_call.1} parent=11 // pred_check_branch
          %251 = sbr.rel (%p249) target = $region40
        $region39: #{tpu_custom_call.1} parent=11 // pred_region
          _
        $region40: #{tpu_custom_call.1} parent=11 // pred_fallthru
          _
      $region12: #{tpu_custom_call.1} parent=5 // pred_fallthru
        _
      %p252 = scmp.lt.s32.totalorder %s17, 2
      // Predicated region
      $region41: #{tpu_custom_call.1} parent=5 // pred_check
        %p253 = pneg %p252
      $region42: #{tpu_custom_call.1} parent=5 // pred_check_branch
        %255 = sbr.rel (%p253) target = $region44
      $region43: #{tpu_custom_call.1} parent=5 // pred_region
        // Predicated region
        $region45: #{tpu_custom_call.1} parent=43 // pred_check
          %p256 = pneg %p37
        $region46: #{tpu_custom_call.1} parent=43 // pred_check_branch
          %258 = sbr.rel (%p256) target = $region48
        $region47: #{tpu_custom_call.1} parent=43 // pred_region
          %p259 = scmp.lt.s32.totalorder %s17, 1
          %s260 = scalar_select %p259, %s17, 1
          %s261 = smul.addr %s260, 8
          %s262 = scalar_lea.vmem %s0, %s261
        $region48: #{tpu_custom_call.1} parent=43 // pred_fallthru
          _
      $region44: #{tpu_custom_call.1} parent=5 // pred_fallthru
        _
      %p263 = scmp.le.s32.totalorder 1, %s17
      %p264 = scmp.lt.s32.totalorder %s17, 3
      %p265 = pnand %p263, %p264
      %p266 = pneg %p265
      // Predicated region
      $region49: #{tpu_custom_call.1} parent=5 // pred_check
        _
      $region50: #{tpu_custom_call.1} parent=5 // pred_check_branch
        %268 = sbr.rel (%p265) target = $region52
      $region51: #{tpu_custom_call.1} parent=5 // pred_region
        %s269 = ssub.s32 %s17, 1
        %p270 = scmp.lt.s32.totalorder %s22, 1
        %s271 = scalar_select %p270, %s22, 1
        %s272 = smul.addr %s271, 8
        %s273 = scalar_lea.vmem %s0, %s272
        %p274 = pneg %p43
        %p275 = pneg %p40
        %p276 = pneg %p64
        %p277 = pneg %p61
        %p278 = pneg %p85
        %p279 = pneg %p82
        %p280 = pneg %p106
        %p281 = pneg %p103
        %p282 = pneg %p127
        %p283 = pneg %p124
        %p284 = pneg %p148
        %p285 = pneg %p145
        %p286 = pneg %p169
        %p287 = pneg %p166
        %p288 = pneg %p190
        %p289 = pneg %p187
        %p290 = pneg %p216
        %p291 = pneg %p213
        %s292 = sand.u32 %s203, 1
        %s293 = scalar_lea.sflag [#allocation3], %s292
        %s294 = sand.u32 %s203, 1
        %s295 = smul.addr %s294, 8
        %s296 = scalar_lea.vmem [#allocation2], %s295
        %p297 = scmp.lt.s32.totalorder %s22, 1
        %s298 = scalar_select %p297, %s22, 1
        %s299 = smul.addr %s298, 8
        %s300 = scalar_lea.vmem %s0, %s299
        %v302 = vld [vmem:[%s300] sm:$0xff]
        %v303 = vld [vmem:[%s1] sm:$0x1]
        %v304 = vld [vmem:[%s2] sm:$0x1]
        %v305 = vld [vmem:[%s7] sm:$0x1]
        %vm306 = vcmask 261120
        %v307 = vsel %vm306, %v302, 0.0
        %308 = vadd.xlane.f32.xlu0 %v307
        %v309 = vpop.xlane.xlu0 %308
        %v310 = vrcp.pop 32.0
        %v311 = vmul.f32 %v309, %v310
        %v312 = vsub.f32 %v302, %v311
        %v313 = vmul.f32 %v312, %v312
        %v314 = vsel %vm306, %v313, 0.0
        %315 = vadd.xlane.f32.xlu0 %v314
        %v316 = vpop.xlane.xlu0 %315
        %v317 = vmul.f32 %v316, %v310
        %v318 = vadd.f32 %v317, 1e-05
        %v319 = vrsqrt.pop %v318
        %v320 = vmul.f32 %v312, %v319
        %v322 = vlaneseq
        %v323 = vshrl.u32 %v322, 7
        %v324 = vsub.s32 0, %v323
        %v325 = vrot.slane %v303, %v324
        %v327 = vmul.f32 %v320, %v325
        %v329 = vlaneseq
        %v330 = vshrl.u32 %v329, 7
        %v331 = vsub.s32 0, %v330
        %v332 = vrot.slane %v304, %v331
        %v334 = vadd.f32 %v327, %v332
        %v335 = vpack.c.bf16 %v334, %v334
        %v336 = vld [vmem:[%s3] sm:$0xf]
        %v337 = vld [vmem:[%s3 + $0x4] sm:$0xf]
        %v338 = vld [vmem:[%s3 + $0x8] sm:$0xf]
        %v339 = vld [vmem:[%s3 + $0xc] sm:$0xf]
        %v340 = vld [vmem:[%s3 + $0x10] sm:$0xf]
        %v341 = vld [vmem:[%s3 + $0x14] sm:$0xf]
        %v342 = vld [vmem:[%s3 + $0x18] sm:$0xf]
        %v343 = vld [vmem:[%s3 + $0x1c] sm:$0xf]
        %v344 = vld [vmem:[%s3 + $0x20] sm:$0xf]
        %v345 = vld [vmem:[%s3 + $0x24] sm:$0xf]
        %v346 = vld [vmem:[%s3 + $0x28] sm:$0xf]
        %v347 = vld [vmem:[%s3 + $0x2c] sm:$0xf]
        %v348 = vld [vmem:[%s3 + $0x30] sm:$0xf]
        %v349 = vld [vmem:[%s3 + $0x34] sm:$0xf]
        %v350 = vld [vmem:[%s3 + $0x38] sm:$0xf]
        %v351 = vld [vmem:[%s3 + $0x3c] sm:$0xf]
        %v356 = vunpack.c.l.b16 %v336
        %v357 = vunpack.c.l.b16 %v337
        %v358 = vunpack.c.l.b16 %v338
        %v359 = vunpack.c.l.b16 %v339
        %v360 = vpack.c.b16 %v357, %v356
        %v361 = vpack.c.b16 %v359, %v358
        %v365 = vsel %vm306, %v335, 0
        %367 = vmatprep.subr.bf16.mxu0 0
        %368 = vmatpush1.bf16.msra.mxu0 %v360
        %369 = vmatprep.subr.bf16.mxu0 0
        %370 = vmatpush1.bf16.msra.mxu0 %v361
        %371 = vmatprep.subr.bf16.mxu0 0
        %372 = vmatpush1.bf16.msra.mxu0 0
        %373 = vmatprep.subr.bf16.mxu0 0
        %374 = vmatpush1.bf16.msra.mxu0 0
        %375 = vmatprep.subr.bf16.mxu0 0
        %376 = vmatpush1.bf16.msra.mxu0 0
        %377 = vmatprep.subr.bf16.mxu0 0
        %378 = vmatpush1.bf16.msra.mxu0 0
        %379 = vmatprep.subr.bf16.mxu0 0
        %380 = vmatpush1.bf16.msra.mxu0 0
        %381 = vmatprep.subr.bf16.mxu0 0
        %382 = vmatpush1.bf16.msra.mxu0 0
        %383 = vmatprep.subr.bf16.mxu0 0
        %384 = vmatpush1.bf16.msra.mxu0 0
        %385 = vmatprep.subr.bf16.mxu0 0
        %386 = vmatpush1.bf16.msra.mxu0 0
        %387 = vmatprep.subr.bf16.mxu0 0
        %388 = vmatpush1.bf16.msra.mxu0 0
        %389 = vmatprep.subr.bf16.mxu0 0
        %390 = vmatpush1.bf16.msra.mxu0 0
        %391 = vmatprep.subr.bf16.mxu0 0
        %392 = vmatpush1.bf16.msra.mxu0 0
        %393 = vmatprep.subr.bf16.mxu0 0
        %394 = vmatpush1.bf16.msra.mxu0 0
        %395 = vmatprep.subr.bf16.mxu0 0
        %396 = vmatpush1.bf16.msra.mxu0 0
        %397 = vmatprep.subr.bf16.mxu0 0
        %398 = vmatpush1.bf16.msra.mxu0 0
        %399 = vmatprep.mubr.bf16.mxu0 0
        %400 = vmatmul.mubr.bf16.gmra.mrb[0].mxu0 %v365
        %v401 = vpop.f32.mrb[0].mxu0
        %v402 = vadd.f32 0.0, %v401
        %v403 = vpop.f32.mrb[0].mxu0
        %v404 = vpop.f32.mrb[0].mxu0
        %v405 = vpop.f32.mrb[0].mxu0
        %406 = vdwg.mxu0
        %v411 = vunpack.c.l.b16 %v340
        %v412 = vunpack.c.l.b16 %v341
        %v413 = vunpack.c.l.b16 %v342
        %v414 = vunpack.c.l.b16 %v343
        %v415 = vpack.c.b16 %v412, %v411
        %v416 = vpack.c.b16 %v414, %v413
        %419 = vmatprep.subr.bf16.mxu0 0
        %420 = vmatpush1.bf16.msra.mxu0 %v415
        %421 = vmatprep.subr.bf16.mxu0 0
        %422 = vmatpush1.bf16.msra.mxu0 %v416
        %423 = vmatprep.subr.bf16.mxu0 0
        %424 = vmatpush1.bf16.msra.mxu0 0
        %425 = vmatprep.subr.bf16.mxu0 0
        %426 = vmatpush1.bf16.msra.mxu0 0
        %427 = vmatprep.subr.bf16.mxu0 0
        %428 = vmatpush1.bf16.msra.mxu0 0
        %429 = vmatprep.subr.bf16.mxu0 0
        %430 = vmatpush1.bf16.msra.mxu0 0
        %431 = vmatprep.subr.bf16.mxu0 0
        %432 = vmatpush1.bf16.msra.mxu0 0
        %433 = vmatprep.subr.bf16.mxu0 0
        %434 = vmatpush1.bf16.msra.mxu0 0
        %435 = vmatprep.subr.bf16.mxu0 0
        %436 = vmatpush1.bf16.msra.mxu0 0
        %437 = vmatprep.subr.bf16.mxu0 0
        %438 = vmatpush1.bf16.msra.mxu0 0
        %439 = vmatprep.subr.bf16.mxu0 0
        %440 = vmatpush1.bf16.msra.mxu0 0
        %441 = vmatprep.subr.bf16.mxu0 0
        %442 = vmatpush1.bf16.msra.mxu0 0
        %443 = vmatprep.subr.bf16.mxu0 0
        %444 = vmatpush1.bf16.msra.mxu0 0
        %445 = vmatprep.subr.bf16.mxu0 0
        %446 = vmatpush1.bf16.msra.mxu0 0
        %447 = vmatprep.subr.bf16.mxu0 0
        %448 = vmatpush1.bf16.msra.mxu0 0
        %449 = vmatprep.subr.bf16.mxu0 0
        %450 = vmatpush1.bf16.msra.mxu0 0
        %451 = vmatprep.mubr.bf16.mxu0 0
        %452 = vmatmul.mubr.bf16.gmra.mrb[0].mxu0 %v365
        %v453 = vpop.f32.mrb[0].mxu0
        %v454 = vadd.f32 0.0, %v453
        %v455 = vpop.f32.mrb[0].mxu0
        %v456 = vpop.f32.mrb[0].mxu0
        %v457 = vpop.f32.mrb[0].mxu0
        %458 = vdwg.mxu0
        %v463 = vunpack.c.l.b16 %v344
        %v464 = vunpack.c.l.b16 %v345
        %v465 = vunpack.c.l.b16 %v346
        %v466 = vunpack.c.l.b16 %v347
        %v467 = vpack.c.b16 %v464, %v463
        %v468 = vpack.c.b16 %v466, %v465
        %471 = vmatprep.subr.bf16.mxu0 0
        %472 = vmatpush1.bf16.msra.mxu0 %v467
        %473 = vmatprep.subr.bf16.mxu0 0
        %474 = vmatpush1.bf16.msra.mxu0 %v468
        %475 = vmatprep.subr.bf16.mxu0 0
        %476 = vmatpush1.bf16.msra.mxu0 0
        %477 = vmatprep.subr.bf16.mxu0 0
        %478 = vmatpush1.bf16.msra.mxu0 0
        %479 = vmatprep.subr.bf16.mxu0 0
        %480 = vmatpush1.bf16.msra.mxu0 0
        %481 = vmatprep.subr.bf16.mxu0 0
        %482 = vmatpush1.bf16.msra.mxu0 0
        %483 = vmatprep.subr.bf16.mxu0 0
        %484 = vmatpush1.bf16.msra.mxu0 0
        %485 = vmatprep.subr.bf16.mxu0 0
        %486 = vmatpush1.bf16.msra.mxu0 0
        %487 = vmatprep.subr.bf16.mxu0 0
        %488 = vmatpush1.bf16.msra.mxu0 0
        %489 = vmatprep.subr.bf16.mxu0 0
        %490 = vmatpush1.bf16.msra.mxu0 0
        %491 = vmatprep.subr.bf16.mxu0 0
        %492 = vmatpush1.bf16.msra.mxu0 0
        %493 = vmatprep.subr.bf16.mxu0 0
        %494 = vmatpush1.bf16.msra.mxu0 0
        %495 = vmatprep.subr.bf16.mxu0 0
        %496 = vmatpush1.bf16.msra.mxu0 0
        %497 = vmatprep.subr.bf16.mxu0 0
        %498 = vmatpush1.bf16.msra.mxu0 0
        %499 = vmatprep.subr.bf16.mxu0 0
        %500 = vmatpush1.bf16.msra.mxu0 0
        %501 = vmatprep.subr.bf16.mxu0 0
        %502 = vmatpush1.bf16.msra.mxu0 0
        %503 = vmatprep.mubr.bf16.mxu0 0
        %504 = vmatmul.mubr.bf16.gmra.mrb[0].mxu0 %v365
        %v505 = vpop.f32.mrb[0].mxu0
        %v506 = vadd.f32 0.0, %v505
        %v507 = vpop.f32.mrb[0].mxu0
        %v508 = vpop.f32.mrb[0].mxu0
        %v509 = vpop.f32.mrb[0].mxu0
        %510 = vdwg.mxu0
        %v515 = vunpack.c.l.b16 %v348
        %v516 = vunpack.c.l.b16 %v349
        %v517 = vunpack.c.l.b16 %v350
        %v518 = vunpack.c.l.b16 %v351
        %v519 = vpack.c.b16 %v516, %v515
        %v520 = vpack.c.b16 %v518, %v517
        %523 = vmatprep.subr.bf16.mxu0 0
        %524 = vmatpush1.bf16.msra.mxu0 %v519
        %525 = vmatprep.subr.bf16.mxu0 0
        %526 = vmatpush1.bf16.msra.mxu0 %v520
        %527 = vmatprep.subr.bf16.mxu0 0
        %528 = vmatpush1.bf16.msra.mxu0 0
        %529 = vmatprep.subr.bf16.mxu0 0
        %530 = vmatpush1.bf16.msra.mxu0 0
        %531 = vmatprep.subr.bf16.mxu0 0
        %532 = vmatpush1.bf16.msra.mxu0 0
        %533 = vmatprep.subr.bf16.mxu0 0
        %534 = vmatpush1.bf16.msra.mxu0 0
        %535 = vmatprep.subr.bf16.mxu0 0
        %536 = vmatpush1.bf16.msra.mxu0 0
        %537 = vmatprep.subr.bf16.mxu0 0
        %538 = vmatpush1.bf16.msra.mxu0 0
        %539 = vmatprep.subr.bf16.mxu0 0
        %540 = vmatpush1.bf16.msra.mxu0 0
        %541 = vmatprep.subr.bf16.mxu0 0
        %542 = vmatpush1.bf16.msra.mxu0 0
        %543 = vmatprep.subr.bf16.mxu0 0
        %544 = vmatpush1.bf16.msra.mxu0 0
        %545 = vmatprep.subr.bf16.mxu0 0
        %546 = vmatpush1.bf16.msra.mxu0 0
        %547 = vmatprep.subr.bf16.mxu0 0
        %548 = vmatpush1.bf16.msra.mxu0 0
        %549 = vmatprep.subr.bf16.mxu0 0
        %550 = vmatpush1.bf16.msra.mxu0 0
        %551 = vmatprep.subr.bf16.mxu0 0
        %552 = vmatpush1.bf16.msra.mxu0 0
        %553 = vmatprep.subr.bf16.mxu0 0
        %554 = vmatpush1.bf16.msra.mxu0 0
        %555 = vmatprep.mubr.bf16.mxu0 0
        %556 = vmatmul.mubr.bf16.gmra.mrb[0].mxu0 %v365
        %v557 = vpop.f32.mrb[0].mxu0
        %v558 = vadd.f32 0.0, %v557
        %v559 = vpop.f32.mrb[0].mxu0
        %v560 = vpop.f32.mrb[0].mxu0
        %v561 = vpop.f32.mrb[0].mxu0
        %562 = vdwg.mxu0
        %v563 = vmul.f32 %v402, 0.25
        %v564 = vmul.f32 %v454, 0.25
        %v565 = vmul.f32 %v506, 0.25
        %v566 = vmul.f32 %v558, 0.25
        %v567 = vpack.c.bf16 %v563, %v563
        %v568 = vpack.c.bf16 %v564, %v564
        %v569 = vpack.c.bf16 %v565, %v565
        %v570 = vpack.c.bf16 %v566, %v566
        %v571 = vld [vmem:[%s4] sm:$0xf]
        %v572 = vld [vmem:[%s4 + $0x4] sm:$0xf]
        %v573 = vld [vmem:[%s4 + $0x8] sm:$0xf]
        %v574 = vld [vmem:[%s4 + $0xc] sm:$0xf]
        %v575 = vld [vmem:[%s4 + $0x10] sm:$0xf]
        %v576 = vld [vmem:[%s4 + $0x14] sm:$0xf]
        %v577 = vld [vmem:[%s4 + $0x18] sm:$0xf]
        %v578 = vld [vmem:[%s4 + $0x1c] sm:$0xf]
        %v579 = vld [vmem:[%s4 + $0x20] sm:$0xf]
        %v580 = vld [vmem:[%s4 + $0x24] sm:$0xf]
        %v581 = vld [vmem:[%s4 + $0x28] sm:$0xf]
        %v582 = vld [vmem:[%s4 + $0x2c] sm:$0xf]
        %v583 = vld [vmem:[%s4 + $0x30] sm:$0xf]
        %v584 = vld [vmem:[%s4 + $0x34] sm:$0xf]
        %v585 = vld [vmem:[%s4 + $0x38] sm:$0xf]
        %v586 = vld [vmem:[%s4 + $0x3c] sm:$0xf]
        %v591 = vunpack.c.l.b16 %v571
        %v592 = vunpack.c.l.b16 %v572
        %v593 = vunpack.c.l.b16 %v573
        %v594 = vunpack.c.l.b16 %v574
        %v595 = vpack.c.b16 %v592, %v591
        %v596 = vpack.c.b16 %v594, %v593
        %599 = vmatprep.subr.bf16.mxu0 0
        %600 = vmatpush1.bf16.msra.mxu0 %v595
        %601 = vmatprep.subr.bf16.mxu0 0
        %602 = vmatpush1.bf16.msra.mxu0 %v596
        %603 = vmatprep.subr.bf16.mxu0 0
        %604 = vmatpush1.bf16.msra.mxu0 0
        %605 = vmatprep.subr.bf16.mxu0 0
        %606 = vmatpush1.bf16.msra.mxu0 0
        %607 = vmatprep.subr.bf16.mxu0 0
        %608 = vmatpush1.bf16.msra.mxu0 0
        %609 = vmatprep.subr.bf16.mxu0 0
        %610 = vmatpush1.bf16.msra.mxu0 0
        %611 = vmatprep.subr.bf16.mxu0 0
        %612 = vmatpush1.bf16.msra.mxu0 0
        %613 = vmatprep.subr.bf16.mxu0 0
        %614 = vmatpush1.bf16.msra.mxu0 0
        %615 = vmatprep.subr.bf16.mxu0 0
        %616 = vmatpush1.bf16.msra.mxu0 0
        %617 = vmatprep.subr.bf16.mxu0 0
        %618 = vmatpush1.bf16.msra.mxu0 0
        %619 = vmatprep.subr.bf16.mxu0 0
        %620 = vmatpush1.bf16.msra.mxu0 0
        %621 = vmatprep.subr.bf16.mxu0 0
        %622 = vmatpush1.bf16.msra.mxu0 0
        %623 = vmatprep.subr.bf16.mxu0 0
        %624 = vmatpush1.bf16.msra.mxu0 0
        %625 = vmatprep.subr.bf16.mxu0 0
        %626 = vmatpush1.bf16.msra.mxu0 0
        %627 = vmatprep.subr.bf16.mxu0 0
        %628 = vmatpush1.bf16.msra.mxu0 0
        %629 = vmatprep.subr.bf16.mxu0 0
        %630 = vmatpush1.bf16.msra.mxu0 0
        %631 = vmatprep.mubr.bf16.mxu0 0
        %632 = vmatmul.mubr.bf16.gmra.mrb[0].mxu0 %v365
        %v633 = vpop.f32.mrb[0].mxu0
        %v634 = vadd.f32 0.0, %v633
        %v635 = vpop.f32.mrb[0].mxu0
        %v636 = vpop.f32.mrb[0].mxu0
        %v637 = vpop.f32.mrb[0].mxu0
        %638 = vdwg.mxu0
        %v643 = vunpack.c.l.b16 %v575
        %v644 = vunpack.c.l.b16 %v576
        %v645 = vunpack.c.l.b16 %v577
        %v646 = vunpack.c.l.b16 %v578
        %v647 = vpack.c.b16 %v644, %v643
        %v648 = vpack.c.b16 %v646, %v645
        %651 = vmatprep.subr.bf16.mxu0 0
        %652 = vmatpush1.bf16.msra.mxu0 %v647
        %653 = vmatprep.subr.bf16.mxu0 0
        %654 = vmatpush1.bf16.msra.mxu0 %v648
        %655 = vmatprep.subr.bf16.mxu0 0
        %656 = vmatpush1.bf16.msra.mxu0 0
        %657 = vmatprep.subr.bf16.mxu0 0
        %658 = vmatpush1.bf16.msra.mxu0 0
        %659 = vmatprep.subr.bf16.mxu0 0
        %660 = vmatpush1.bf16.msra.mxu0 0
        %661 = vmatprep.subr.bf16.mxu0 0
        %662 = vmatpush1.bf16.msra.mxu0 0
        %663 = vmatprep.subr.bf16.mxu0 0
        %664 = vmatpush1.bf16.msra.mxu0 0
        %665 = vmatprep.subr.bf16.mxu0 0
        %666 = vmatpush1.bf16.msra.mxu0 0
        %667 = vmatprep.subr.bf16.mxu0 0
        %668 = vmatpush1.bf16.msra.mxu0 0
        %669 = vmatprep.subr.bf16.mxu0 0
        %670 = vmatpush1.bf16.msra.mxu0 0
        %671 = vmatprep.subr.bf16.mxu0 0
        %672 = vmatpush1.bf16.msra.mxu0 0
        %673 = vmatprep.subr.bf16.mxu0 0
        %674 = vmatpush1.bf16.msra.mxu0 0
        %675 = vmatprep.subr.bf16.mxu0 0
        %676 = vmatpush1.bf16.msra.mxu0 0
        %677 = vmatprep.subr.bf16.mxu0 0
        %678 = vmatpush1.bf16.msra.mxu0 0
        %679 = vmatprep.subr.bf16.mxu0 0
        %680 = vmatpush1.bf16.msra.mxu0 0
        %681 = vmatprep.subr.bf16.mxu0 0
        %682 = vmatpush1.bf16.msra.mxu0 0
        %683 = vmatprep.mubr.bf16.mxu0 0
        %684 = vmatmul.mubr.bf16.gmra.mrb[0].mxu0 %v365
        %v685 = vpop.f32.mrb[0].mxu0
        %v686 = vadd.f32 0.0, %v685
        %v687 = vpop.f32.mrb[0].mxu0
        %v688 = vpop.f32.mrb[0].mxu0
        %v689 = vpop.f32.mrb[0].mxu0
        %690 = vdwg.mxu0
        %v695 = vunpack.c.l.b16 %v579
        %v696 = vunpack.c.l.b16 %v580
        %v697 = vunpack.c.l.b16 %v581
        %v698 = vunpack.c.l.b16 %v582
        %v699 = vpack.c.b16 %v696, %v695
        %v700 = vpack.c.b16 %v698, %v697
        %703 = vmatprep.subr.bf16.mxu0 0
        %704 = vmatpush1.bf16.msra.mxu0 %v699
        %705 = vmatprep.subr.bf16.mxu0 0
        %706 = vmatpush1.bf16.msra.mxu0 %v700
        %707 = vmatprep.subr.bf16.mxu0 0
        %708 = vmatpush1.bf16.msra.mxu0 0
        %709 = vmatprep.subr.bf16.mxu0 0
        %710 = vmatpush1.bf16.msra.mxu0 0
        %711 = vmatprep.subr.bf16.mxu0 0
        %712 = vmatpush1.bf16.msra.mxu0 0
        %713 = vmatprep.subr.bf16.mxu0 0
        %714 = vmatpush1.bf16.msra.mxu0 0
        %715 = vmatprep.subr.bf16.mxu0 0
        %716 = vmatpush1.bf16.msra.mxu0 0
        %717 = vmatprep.subr.bf16.mxu0 0
        %718 = vmatpush1.bf16.msra.mxu0 0
        %719 = vmatprep.subr.bf16.mxu0 0
        %720 = vmatpush1.bf16.msra.mxu0 0
        %721 = vmatprep.subr.bf16.mxu0 0
        %722 = vmatpush1.bf16.msra.mxu0 0
        %723 = vmatprep.subr.bf16.mxu0 0
        %724 = vmatpush1.bf16.msra.mxu0 0
        %725 = vmatprep.subr.bf16.mxu0 0
        %726 = vmatpush1.bf16.msra.mxu0 0
        %727 = vmatprep.subr.bf16.mxu0 0
        %728 = vmatpush1.bf16.msra.mxu0 0
        %729 = vmatprep.subr.bf16.mxu0 0
        %730 = vmatpush1.bf16.msra.mxu0 0
        %731 = vmatprep.subr.bf16.mxu0 0
        %732 = vmatpush1.bf16.msra.mxu0 0
        %733 = vmatprep.subr.bf16.mxu0 0
        %734 = vmatpush1.bf16.msra.mxu0 0
        %735 = vmatprep.mubr.bf16.mxu0 0
        %736 = vmatmul.mubr.bf16.gmra.mrb[0].mxu0 %v365
        %v737 = vpop.f32.mrb[0].mxu0
        %v738 = vadd.f32 0.0, %v737
        %v739 = vpop.f32.mrb[0].mxu0
        %v740 = vpop.f32.mrb[0].mxu0
        %v741 = vpop.f32.mrb[0].mxu0
        %742 = vdwg.mxu0
        %v747 = vunpack.c.l.b16 %v583
        %v748 = vunpack.c.l.b16 %v584
        %v749 = vunpack.c.l.b16 %v585
        %v750 = vunpack.c.l.b16 %v586
        %v751 = vpack.c.b16 %v748, %v747
        %v752 = vpack.c.b16 %v750, %v749
        %755 = vmatprep.subr.bf16.mxu0 0
        %756 = vmatpush1.bf16.msra.mxu0 %v751
        %757 = vmatprep.subr.bf16.mxu0 0
        %758 = vmatpush1.bf16.msra.mxu0 %v752
        %759 = vmatprep.subr.bf16.mxu0 0
        %760 = vmatpush1.bf16.msra.mxu0 0
        %761 = vmatprep.subr.bf16.mxu0 0
        %762 = vmatpush1.bf16.msra.mxu0 0
        %763 = vmatprep.subr.bf16.mxu0 0
        %764 = vmatpush1.bf16.msra.mxu0 0
        %765 = vmatprep.subr.bf16.mxu0 0
        %766 = vmatpush1.bf16.msra.mxu0 0
        %767 = vmatprep.subr.bf16.mxu0 0
        %768 = vmatpush1.bf16.msra.mxu0 0
        %769 = vmatprep.subr.bf16.mxu0 0
        %770 = vmatpush1.bf16.msra.mxu0 0
        %771 = vmatprep.subr.bf16.mxu0 0
        %772 = vmatpush1.bf16.msra.mxu0 0
        %773 = vmatprep.subr.bf16.mxu0 0
        %774 = vmatpush1.bf16.msra.mxu0 0
        %775 = vmatprep.subr.bf16.mxu0 0
        %776 = vmatpush1.bf16.msra.mxu0 0
        %777 = vmatprep.subr.bf16.mxu0 0
        %778 = vmatpush1.bf16.msra.mxu0 0
        %779 = vmatprep.subr.bf16.mxu0 0
        %780 = vmatpush1.bf16.msra.mxu0 0
        %781 = vmatprep.subr.bf16.mxu0 0
        %782 = vmatpush1.bf16.msra.mxu0 0
        %783 = vmatprep.subr.bf16.mxu0 0
        %784 = vmatpush1.bf16.msra.mxu0 0
        %785 = vmatprep.subr.bf16.mxu0 0
        %786 = vmatpush1.bf16.msra.mxu0 0
        %787 = vmatprep.mubr.bf16.mxu0 0
        %788 = vmatmul.mubr.bf16.gmra.mrb[0].mxu0 %v365
        %v789 = vpop.f32.mrb[0].mxu0
        %v790 = vadd.f32 0.0, %v789
        %v791 = vpop.f32.mrb[0].mxu0
        %v792 = vpop.f32.mrb[0].mxu0
        %v793 = vpop.f32.mrb[0].mxu0
        %794 = vdwg.mxu0
        %v795 = vpack.c.bf16 %v634, %v634
        %v796 = vpack.c.bf16 %v686, %v686
        %v797 = vpack.c.bf16 %v738, %v738
        %v798 = vpack.c.bf16 %v790, %v790
        %v799 = vld [vmem:[%s5] sm:$0xf]
        %v800 = vld [vmem:[%s5 + $0x4] sm:$0xf]
        %v801 = vld [vmem:[%s5 + $0x8] sm:$0xf]
        %v802 = vld [vmem:[%s5 + $0xc] sm:$0xf]
        %v803 = vld [vmem:[%s5 + $0x10] sm:$0xf]
        %v804 = vld [vmem:[%s5 + $0x14] sm:$0xf]
        %v805 = vld [vmem:[%s5 + $0x18] sm:$0xf]
        %v806 = vld [vmem:[%s5 + $0x1c] sm:$0xf]
        %v807 = vld [vmem:[%s5 + $0x20] sm:$0xf]
        %v808 = vld [vmem:[%s5 + $0x24] sm:$0xf]
        %v809 = vld [vmem:[%s5 + $0x28] sm:$0xf]
        %v810 = vld [vmem:[%s5 + $0x2c] sm:$0xf]
        %v811 = vld [vmem:[%s5 + $0x30] sm:$0xf]
        %v812 = vld [vmem:[%s5 + $0x34] sm:$0xf]
        %v813 = vld [vmem:[%s5 + $0x38] sm:$0xf]
        %v814 = vld [vmem:[%s5 + $0x3c] sm:$0xf]
        %v819 = vunpack.c.l.b16 %v799
        %v820 = vunpack.c.l.b16 %v800
        %v821 = vunpack.c.l.b16 %v801
        %v822 = vunpack.c.l.b16 %v802
        %v823 = vpack.c.b16 %v820, %v819
        %v824 = vpack.c.b16 %v822, %v821
        %827 = vmatprep.subr.bf16.mxu0 0
        %828 = vmatpush1.bf16.msra.mxu0 %v823
        %829 = vmatprep.subr.bf16.mxu0 0
        %830 = vmatpush1.bf16.msra.mxu0 %v824
        %831 = vmatprep.subr.bf16.mxu0 0
        %832 = vmatpush1.bf16.msra.mxu0 0
        %833 = vmatprep.subr.bf16.mxu0 0
        %834 = vmatpush1.bf16.msra.mxu0 0
        %835 = vmatprep.subr.bf16.mxu0 0
        %836 = vmatpush1.bf16.msra.mxu0 0
        %837 = vmatprep.subr.bf16.mxu0 0
        %838 = vmatpush1.bf16.msra.mxu0 0
        %839 = vmatprep.subr.bf16.mxu0 0
        %840 = vmatpush1.bf16.msra.mxu0 0
        %841 = vmatprep.subr.bf16.mxu0 0
        %842 = vmatpush1.bf16.msra.mxu0 0
        %843 = vmatprep.subr.bf16.mxu0 0
        %844 = vmatpush1.bf16.msra.mxu0 0
        %845 = vmatprep.subr.bf16.mxu0 0
        %846 = vmatpush1.bf16.msra.mxu0 0
        %847 = vmatprep.subr.bf16.mxu0 0
        %848 = vmatpush1.bf16.msra.mxu0 0
        %849 = vmatprep.subr.bf16.mxu0 0
        %850 = vmatpush1.bf16.msra.mxu0 0
        %851 = vmatprep.subr.bf16.mxu0 0
        %852 = vmatpush1.bf16.msra.mxu0 0
        %853 = vmatprep.subr.bf16.mxu0 0
        %854 = vmatpush1.bf16.msra.mxu0 0
        %855 = vmatprep.subr.bf16.mxu0 0
        %856 = vmatpush1.bf16.msra.mxu0 0
        %857 = vmatprep.subr.bf16.mxu0 0
        %858 = vmatpush1.bf16.msra.mxu0 0
        %859 = vmatprep.mubr.bf16.mxu0 0
        %860 = vmatmul.mubr.bf16.gmra.mrb[0].mxu0 %v365
        %v861 = vpop.f32.mrb[0].mxu0
        %v862 = vadd.f32 0.0, %v861
        %v863 = vpop.f32.mrb[0].mxu0
        %v864 = vpop.f32.mrb[0].mxu0
        %v865 = vpop.f32.mrb[0].mxu0
        %866 = vdwg.mxu0
        %v871 = vunpack.c.l.b16 %v803
        %v872 = vunpack.c.l.b16 %v804
        %v873 = vunpack.c.l.b16 %v805
        %v874 = vunpack.c.l.b16 %v806
        %v875 = vpack.c.b16 %v872, %v871
        %v876 = vpack.c.b16 %v874, %v873
        %879 = vmatprep.subr.bf16.mxu0 0
        %880 = vmatpush1.bf16.msra.mxu0 %v875
        %881 = vmatprep.subr.bf16.mxu0 0
        %882 = vmatpush1.bf16.msra.mxu0 %v876
        %883 = vmatprep.subr.bf16.mxu0 0
        %884 = vmatpush1.bf16.msra.mxu0 0
        %885 = vmatprep.subr.bf16.mxu0 0
        %886 = vmatpush1.bf16.msra.mxu0 0
        %887 = vmatprep.subr.bf16.mxu0 0
        %888 = vmatpush1.bf16.msra.mxu0 0
        %889 = vmatprep.subr.bf16.mxu0 0
        %890 = vmatpush1.bf16.msra.mxu0 0
        %891 = vmatprep.subr.bf16.mxu0 0
        %892 = vmatpush1.bf16.msra.mxu0 0
        %893 = vmatprep.subr.bf16.mxu0 0
        %894 = vmatpush1.bf16.msra.mxu0 0
        %895 = vmatprep.subr.bf16.mxu0 0
        %896 = vmatpush1.bf16.msra.mxu0 0
        %897 = vmatprep.subr.bf16.mxu0 0
        %898 = vmatpush1.bf16.msra.mxu0 0
        %899 = vmatprep.subr.bf16.mxu0 0
        %900 = vmatpush1.bf16.msra.mxu0 0
        %901 = vmatprep.subr.bf16.mxu0 0
        %902 = vmatpush1.bf16.msra.mxu0 0
        %903 = vmatprep.subr.bf16.mxu0 0
        %904 = vmatpush1.bf16.msra.mxu0 0
        %905 = vmatprep.subr.bf16.mxu0 0
        %906 = vmatpush1.bf16.msra.mxu0 0
        %907 = vmatprep.subr.bf16.mxu0 0
        %908 = vmatpush1.bf16.msra.mxu0 0
        %909 = vmatprep.subr.bf16.mxu0 0
        %910 = vmatpush1.bf16.msra.mxu0 0
        %911 = vmatprep.mubr.bf16.mxu0 0
        %912 = vmatmul.mubr.bf16.gmra.mrb[0].mxu0 %v365
        %v913 = vpop.f32.mrb[0].mxu0
        %v914 = vadd.f32 0.0, %v913
        %v915 = vpop.f32.mrb[0].mxu0
        %v916 = vpop.f32.mrb[0].mxu0
        %v917 = vpop.f32.mrb[0].mxu0
        %918 = vdwg.mxu0
        %v923 = vunpack.c.l.b16 %v807
        %v924 = vunpack.c.l.b16 %v808
        %v925 = vunpack.c.l.b16 %v809
        %v926 = vunpack.c.l.b16 %v810
        %v927 = vpack.c.b16 %v924, %v923
        %v928 = vpack.c.b16 %v926, %v925
        %931 = vmatprep.subr.bf16.mxu0 0
        %932 = vmatpush1.bf16.msra.mxu0 %v927
        %933 = vmatprep.subr.bf16.mxu0 0
        %934 = vmatpush1.bf16.msra.mxu0 %v928
        %935 = vmatprep.subr.bf16.mxu0 0
        %936 = vmatpush1.bf16.msra.mxu0 0
        %937 = vmatprep.subr.bf16.mxu0 0
        %938 = vmatpush1.bf16.msra.mxu0 0
        %939 = vmatprep.subr.bf16.mxu0 0
        %940 = vmatpush1.bf16.msra.mxu0 0
        %941 = vmatprep.subr.bf16.mxu0 0
        %942 = vmatpush1.bf16.msra.mxu0 0
        %943 = vmatprep.subr.bf16.mxu0 0
        %944 = vmatpush1.bf16.msra.mxu0 0
        %945 = vmatprep.subr.bf16.mxu0 0
        %946 = vmatpush1.bf16.msra.mxu0 0
        %947 = vmatprep.subr.bf16.mxu0 0
        %948 = vmatpush1.bf16.msra.mxu0 0
        %949 = vmatprep.subr.bf16.mxu0 0
        %950 = vmatpush1.bf16.msra.mxu0 0
        %951 = vmatprep.subr.bf16.mxu0 0
        %952 = vmatpush1.bf16.msra.mxu0 0
        %953 = vmatprep.subr.bf16.mxu0 0
        %954 = vmatpush1.bf16.msra.mxu0 0
        %955 = vmatprep.subr.bf16.mxu0 0
        %956 = vmatpush1.bf16.msra.mxu0 0
        %957 = vmatprep.subr.bf16.mxu0 0
        %958 = vmatpush1.bf16.msra.mxu0 0
        %959 = vmatprep.subr.bf16.mxu0 0
        %960 = vmatpush1.bf16.msra.mxu0 0
        %961 = vmatprep.subr.bf16.mxu0 0
        %962 = vmatpush1.bf16.msra.mxu0 0
        %963 = vmatprep.mubr.bf16.mxu0 0
        %964 = vmatmul.mubr.bf16.gmra.mrb[0].mxu0 %v365
        %v965 = vpop.f32.mrb[0].mxu0
        %v966 = vadd.f32 0.0, %v965
        %v967 = vpop.f32.mrb[0].mxu0
        %v968 = vpop.f32.mrb[0].mxu0
        %v969 = vpop.f32.mrb[0].mxu0
        %970 = vdwg.mxu0
        %v975 = vunpack.c.l.b16 %v811
        %v976 = vunpack.c.l.b16 %v812
        %v977 = vunpack.c.l.b16 %v813
        %v978 = vunpack.c.l.b16 %v814
        %v979 = vpack.c.b16 %v976, %v975
        %v980 = vpack.c.b16 %v978, %v977
        %983 = vmatprep.subr.bf16.mxu0 0
        %984 = vmatpush1.bf16.msra.mxu0 %v979
        %985 = vmatprep.subr.bf16.mxu0 0
        %986 = vmatpush1.bf16.msra.mxu0 %v980
        %987 = vmatprep.subr.bf16.mxu0 0
        %988 = vmatpush1.bf16.msra.mxu0 0
        %989 = vmatprep.subr.bf16.mxu0 0
        %990 = vmatpush1.bf16.msra.mxu0 0
        %991 = vmatprep.subr.bf16.mxu0 0
        %992 = vmatpush1.bf16.msra.mxu0 0
        %993 = vmatprep.subr.bf16.mxu0 0
        %994 = vmatpush1.bf16.msra.mxu0 0
        %995 = vmatprep.subr.bf16.mxu0 0
        %996 = vmatpush1.bf16.msra.mxu0 0
        %997 = vmatprep.subr.bf16.mxu0 0
        %998 = vmatpush1.bf16.msra.mxu0 0
        %999 = vmatprep.subr.bf16.mxu0 0
        %1000 = vmatpush1.bf16.msra.mxu0 0
        %1001 = vmatprep.subr.bf16.mxu0 0
        %1002 = vmatpush1.bf16.msra.mxu0 0
        %1003 = vmatprep.subr.bf16.mxu0 0
        %1004 = vmatpush1.bf16.msra.mxu0 0
        %1005 = vmatprep.subr.bf16.mxu0 0
        %1006 = vmatpush1.bf16.msra.mxu0 0
        %1007 = vmatprep.subr.bf16.mxu0 0
        %1008 = vmatpush1.bf16.msra.mxu0 0
        %1009 = vmatprep.subr.bf16.mxu0 0
        %1010 = vmatpush1.bf16.msra.mxu0 0
        %1011 = vmatprep.subr.bf16.mxu0 0
        %1012 = vmatpush1.bf16.msra.mxu0 0
        %1013 = vmatprep.subr.bf16.mxu0 0
        %1014 = vmatpush1.bf16.msra.mxu0 0
        %1015 = vmatprep.mubr.bf16.mxu0 0
        %1016 = vmatmul.mubr.bf16.gmra.mrb[0].mxu0 %v365
        %v1017 = vpop.f32.mrb[0].mxu0
        %v1018 = vadd.f32 0.0, %v1017
        %v1019 = vpop.f32.mrb[0].mxu0
        %v1020 = vpop.f32.mrb[0].mxu0
        %v1021 = vpop.f32.mrb[0].mxu0
        %1022 = vdwg.mxu0
        %v1023 = vpack.c.bf16 %v862, %v862
        %v1024 = vpack.c.bf16 %v914, %v914
        %v1025 = vpack.c.bf16 %v966, %v966
        %v1026 = vpack.c.bf16 %v1018, %v1018
        %vm1027 = vcmask 130048
        %v1029 = vsel %vm1027, %v567, 0
        %v1032 = vsel %vm1027, %v795, 0
        %1034 = vmatprep.subr.bf16.mxu0 0
        %1035 = vmatpush1.bf16.xpose.msra.mxu0 %v1032
        %1036 = vmatprep.subr.bf16.mxu0 0
        %1037 = vmatpush1.bf16.xpose.msra.mxu0 0
        %1038 = vmatprep.subr.bf16.mxu0 0
        %1039 = vmatpush1.bf16.xpose.msra.mxu0 0
        %1040 = vmatprep.subr.bf16.mxu0 0
        %1041 = vmatpush1.bf16.xpose.msra.mxu0 0
        %1042 = vmatprep.subr.bf16.mxu0 0
        %1043 = vmatpush1.bf16.xpose.msra.mxu0 0
        %1044 = vmatprep.subr.bf16.mxu0 0
        %1045 = vmatpush1.bf16.xpose.msra.mxu0 0
        %1046 = vmatprep.subr.bf16.mxu0 0
        %1047 = vmatpush1.bf16.xpose.msra.mxu0 0
        %1048 = vmatprep.subr.bf16.mxu0 0
        %1049 = vmatpush1.bf16.xpose.msra.mxu0 0
        %1050 = vmatprep.subr.bf16.mxu0 0
        %1051 = vmatpush1.bf16.xpose.msra.mxu0 0
        %1052 = vmatprep.subr.bf16.mxu0 0
        %1053 = vmatpush1.bf16.xpose.msra.mxu0 0
        %1054 = vmatprep.subr.bf16.mxu0 0
        %1055 = vmatpush1.bf16.xpose.msra.mxu0 0
        %1056 = vmatprep.subr.bf16.mxu0 0
        %1057 = vmatpush1.bf16.xpose.msra.mxu0 0
        %1058 = vmatprep.subr.bf16.mxu0 0
        %1059 = vmatpush1.bf16.xpose.msra.mxu0 0
        %1060 = vmatprep.subr.bf16.mxu0 0
        %1061 = vmatpush1.bf16.xpose.msra.mxu0 0
        %1062 = vmatprep.subr.bf16.mxu0 0
        %1063 = vmatpush1.bf16.xpose.msra.mxu0 0
        %1064 = vmatprep.subr.bf16.mxu0 0
        %1065 = vmatpush1.bf16.xpose.msra.mxu0 0
        %1066 = vmatprep.mubr.bf16.mxu0 0
        %1067 = vmatmul.mubr.bf16.gmra.mrb[0].mxu0 %v1029
        %v1068 = vpop.f32.mrb[0].mxu0
        %v1069 = vadd.f32 0.0, %v1068
        %v1070 = vpop.f32.mrb[0].mxu0
        %v1071 = vpop.f32.mrb[0].mxu0
        %v1072 = vpop.f32.mrb[0].mxu0
        %1073 = vdwg.mxu0
        %v1075 = vsel %vm1027, %v568, 0
        %v1078 = vsel %vm1027, %v796, 0
        %1080 = vmatprep.subr.bf16.mxu0 0
        %1081 = vmatpush1.bf16.xpose.msra.mxu0 %v1078
        %1082 = vmatprep.subr.bf16.mxu0 0
        %1083 = vmatpush1.bf16.xpose.msra.mxu0 0
        %1084 = vmatprep.subr.bf16.mxu0 0
        %1085 = vmatpush1.bf16.xpose.msra.mxu0 0
        %1086 = vmatprep.subr.bf16.mxu0 0
        %1087 = vmatpush1.bf16.xpose.msra.mxu0 0
        %1088 = vmatprep.subr.bf16.mxu0 0
        %1089 = vmatpush1.bf16.xpose.msra.mxu0 0
        %1090 = vmatprep.subr.bf16.mxu0 0
        %1091 = vmatpush1.bf16.xpose.msra.mxu0 0
        %1092 = vmatprep.subr.bf16.mxu0 0
        %1093 = vmatpush1.bf16.xpose.msra.mxu0 0
        %1094 = vmatprep.subr.bf16.mxu0 0
        %1095 = vmatpush1.bf16.xpose.msra.mxu0 0
        %1096 = vmatprep.subr.bf16.mxu0 0
        %1097 = vmatpush1.bf16.xpose.msra.mxu0 0
        %1098 = vmatprep.subr.bf16.mxu0 0
        %1099 = vmatpush1.bf16.xpose.msra.mxu0 0
        %1100 = vmatprep.subr.bf16.mxu0 0
        %1101 = vmatpush1.bf16.xpose.msra.mxu0 0
        %1102 = vmatprep.subr.bf16.mxu0 0
        %1103 = vmatpush1.bf16.xpose.msra.mxu0 0
        %1104 = vmatprep.subr.bf16.mxu0 0
        %1105 = vmatpush1.bf16.xpose.msra.mxu0 0
        %1106 = vmatprep.subr.bf16.mxu0 0
        %1107 = vmatpush1.bf16.xpose.msra.mxu0 0
        %1108 = vmatprep.subr.bf16.mxu0 0
        %1109 = vmatpush1.bf16.xpose.msra.mxu0 0
        %1110 = vmatprep.subr.bf16.mxu0 0
        %1111 = vmatpush1.bf16.xpose.msra.mxu0 0
        %1112 = vmatprep.mubr.bf16.mxu0 0
        %1113 = vmatmul.mubr.bf16.gmra.mrb[0].mxu0 %v1075
        %v1114 = vpop.f32.mrb[0].mxu0
        %v1115 = vadd.f32 0.0, %v1114
        %v1116 = vpop.f32.mrb[0].mxu0
        %v1117 = vpop.f32.mrb[0].mxu0
        %v1118 = vpop.f32.mrb[0].mxu0
        %1119 = vdwg.mxu0
        %v1121 = vsel %vm1027, %v569, 0
        %v1124 = vsel %vm1027, %v797, 0
        %1126 = vmatprep.subr.bf16.mxu0 0
        %1127 = vmatpush1.bf16.xpose.msra.mxu0 %v1124
        %1128 = vmatprep.subr.bf16.mxu0 0
        %1129 = vmatpush1.bf16.xpose.msra.mxu0 0
        %1130 = vmatprep.subr.bf16.mxu0 0
        %1131 = vmatpush1.bf16.xpose.msra.mxu0 0
        %1132 = vmatprep.subr.bf16.mxu0 0
        %1133 = vmatpush1.bf16.xpose.msra.mxu0 0
        %1134 = vmatprep.subr.bf16.mxu0 0
        %1135 = vmatpush1.bf16.xpose.msra.mxu0 0
        %1136 = vmatprep.subr.bf16.mxu0 0
        %1137 = vmatpush1.bf16.xpose.msra.mxu0 0
        %1138 = vmatprep.subr.bf16.mxu0 0
        %1139 = vmatpush1.bf16.xpose.msra.mxu0 0
        %1140 = vmatprep.subr.bf16.mxu0 0
        %1141 = vmatpush1.bf16.xpose.msra.mxu0 0
        %1142 = vmatprep.subr.bf16.mxu0 0
        %1143 = vmatpush1.bf16.xpose.msra.mxu0 0
        %1144 = vmatprep.subr.bf16.mxu0 0
        %1145 = vmatpush1.bf16.xpose.msra.mxu0 0
        %1146 = vmatprep.subr.bf16.mxu0 0
        %1147 = vmatpush1.bf16.xpose.msra.mxu0 0
        %1148 = vmatprep.subr.bf16.mxu0 0
        %1149 = vmatpush1.bf16.xpose.msra.mxu0 0
        %1150 = vmatprep.subr.bf16.mxu0 0
        %1151 = vmatpush1.bf16.xpose.msra.mxu0 0
        %1152 = vmatprep.subr.bf16.mxu0 0
        %1153 = vmatpush1.bf16.xpose.msra.mxu0 0
        %1154 = vmatprep.subr.bf16.mxu0 0
        %1155 = vmatpush1.bf16.xpose.msra.mxu0 0
        %1156 = vmatprep.subr.bf16.mxu0 0
        %1157 = vmatpush1.bf16.xpose.msra.mxu0 0
        %1158 = vmatprep.mubr.bf16.mxu0 0
        %1159 = vmatmul.mubr.bf16.gmra.mrb[0].mxu0 %v1121
        %v1160 = vpop.f32.mrb[0].mxu0
        %v1161 = vadd.f32 0.0, %v1160
        %v1162 = vpop.f32.mrb[0].mxu0
        %v1163 = vpop.f32.mrb[0].mxu0
        %v1164 = vpop.f32.mrb[0].mxu0
        %1165 = vdwg.mxu0
        %v1167 = vsel %vm1027, %v570, 0
        %v1170 = vsel %vm1027, %v798, 0
        %1172 = vmatprep.subr.bf16.mxu0 0
        %1173 = vmatpush1.bf16.xpose.msra.mxu0 %v1170
        %1174 = vmatprep.subr.bf16.mxu0 0
        %1175 = vmatpush1.bf16.xpose.msra.mxu0 0
        %1176 = vmatprep.subr.bf16.mxu0 0
        %1177 = vmatpush1.bf16.xpose.msra.mxu0 0
        %1178 = vmatprep.subr.bf16.mxu0 0
        %1179 = vmatpush1.bf16.xpose.msra.mxu0 0
        %1180 = vmatprep.subr.bf16.mxu0 0
        %1181 = vmatpush1.bf16.xpose.msra.mxu0 0
        %1182 = vmatprep.subr.bf16.mxu0 0
        %1183 = vmatpush1.bf16.xpose.msra.mxu0 0
        %1184 = vmatprep.subr.bf16.mxu0 0
        %1185 = vmatpush1.bf16.xpose.msra.mxu0 0
        %1186 = vmatprep.subr.bf16.mxu0 0
        %1187 = vmatpush1.bf16.xpose.msra.mxu0 0
        %1188 = vmatprep.subr.bf16.mxu0 0
        %1189 = vmatpush1.bf16.xpose.msra.mxu0 0
        %1190 = vmatprep.subr.bf16.mxu0 0
        %1191 = vmatpush1.bf16.xpose.msra.mxu0 0
        %1192 = vmatprep.subr.bf16.mxu0 0
        %1193 = vmatpush1.bf16.xpose.msra.mxu0 0
        %1194 = vmatprep.subr.bf16.mxu0 0
        %1195 = vmatpush1.bf16.xpose.msra.mxu0 0
        %1196 = vmatprep.subr.bf16.mxu0 0
        %1197 = vmatpush1.bf16.xpose.msra.mxu0 0
        %1198 = vmatprep.subr.bf16.mxu0 0
        %1199 = vmatpush1.bf16.xpose.msra.mxu0 0
        %1200 = vmatprep.subr.bf16.mxu0 0
        %1201 = vmatpush1.bf16.xpose.msra.mxu0 0
        %1202 = vmatprep.subr.bf16.mxu0 0
        %1203 = vmatpush1.bf16.xpose.msra.mxu0 0
        %1204 = vmatprep.mubr.bf16.mxu0 0
        %1205 = vmatmul.mubr.bf16.gmra.mrb[0].mxu0 %v1167
        %v1206 = vpop.f32.mrb[0].mxu0
        %v1207 = vadd.f32 0.0, %v1206
        %v1208 = vpop.f32.mrb[0].mxu0
        %v1209 = vpop.f32.mrb[0].mxu0
        %v1210 = vpop.f32.mrb[0].mxu0
        %1211 = vdwg.mxu0
        %vm1212 = vcmask 64512
        %v1213 = vsel %vm1212, %v1069, -inf
        %1214 = vmax.xlane.f32.xlu0 %v1213
        %v1215 = vpop.xlane.xlu0 %1214
        %v1216 = vsel %vm1212, %v1115, -inf
        %1217 = vmax.xlane.f32.xlu0 %v1216
        %v1218 = vpop.xlane.xlu0 %1217
        %v1219 = vsel %vm1212, %v1161, -inf
        %1220 = vmax.xlane.f32.xlu0 %v1219
        %v1221 = vpop.xlane.xlu0 %1220
        %v1222 = vsel %vm1212, %v1207, -inf
        %1223 = vmax.xlane.f32.xlu0 %v1222
        %v1224 = vpop.xlane.xlu0 %1223
        %v1225 = vsub.f32 %v1069, %v1215
        %v1226 = vsub.f32 %v1115, %v1218
        %v1227 = vsub.f32 %v1161, %v1221
        %v1228 = vsub.f32 %v1207, %v1224
        %v1229 = vmul.f32 %v1225, 1.442695
        %v1230 = vpow.pop %v1229
        %v1231 = vmul.f32 %v1226, 1.442695
        %v1232 = vpow.pop %v1231
        %v1233 = vmul.f32 %v1227, 1.442695
        %v1234 = vpow.pop %v1233
        %v1235 = vmul.f32 %v1228, 1.442695
        %v1236 = vpow.pop %v1235
        %v1237 = vsel %vm1212, %v1230, 0.0
        %1238 = vadd.xlane.f32.xlu0 %v1237
        %v1239 = vpop.xlane.xlu0 %1238
        %v1240 = vsel %vm1212, %v1232, 0.0
        %1241 = vadd.xlane.f32.xlu0 %v1240
        %v1242 = vpop.xlane.xlu0 %1241
        %v1243 = vsel %vm1212, %v1234, 0.0
        %1244 = vadd.xlane.f32.xlu0 %v1243
        %v1245 = vpop.xlane.xlu0 %1244
        %v1246 = vsel %vm1212, %v1236, 0.0
        %1247 = vadd.xlane.f32.xlu0 %v1246
        %v1248 = vpop.xlane.xlu0 %1247
        %v1249 = vrcp.pop %v1239
        %v1250 = vrcp.pop %v1242
        %v1251 = vrcp.pop %v1245
        %v1252 = vrcp.pop %v1248
        %v1253 = vmul.f32 %v1230, %v1249
        %v1254 = vmul.f32 %v1232, %v1250
        %v1255 = vmul.f32 %v1234, %v1251
        %v1256 = vmul.f32 %v1236, %v1252
        %v1257 = vpack.c.bf16 %v1253, %v1253
        %v1258 = vpack.c.bf16 %v1254, %v1254
        %v1259 = vpack.c.bf16 %v1255, %v1255
        %v1260 = vpack.c.bf16 %v1256, %v1256
        %v1262 = vsel %vm1212, %v1257, 0
        %vm1264 = vcmask 1043456
        %v1266 = vsel %vm1264, %v1023, 0
        %1268 = vmatprep.subr.bf16.mxu0 0
        %1269 = vmatpush1.bf16.msra.mxu0 %v1266
        %1270 = vmatprep.subr.bf16.mxu0 0
        %1271 = vmatpush1.bf16.msra.mxu0 0
        %1272 = vmatprep.subr.bf16.mxu0 0
        %1273 = vmatpush1.bf16.msra.mxu0 0
        %1274 = vmatprep.subr.bf16.mxu0 0
        %1275 = vmatpush1.bf16.msra.mxu0 0
        %1276 = vmatprep.subr.bf16.mxu0 0
        %1277 = vmatpush1.bf16.msra.mxu0 0
        %1278 = vmatprep.subr.bf16.mxu0 0
        %1279 = vmatpush1.bf16.msra.mxu0 0
        %1280 = vmatprep.subr.bf16.mxu0 0
        %1281 = vmatpush1.bf16.msra.mxu0 0
        %1282 = vmatprep.subr.bf16.mxu0 0
        %1283 = vmatpush1.bf16.msra.mxu0 0
        %1284 = vmatprep.subr.bf16.mxu0 0
        %1285 = vmatpush1.bf16.msra.mxu0 0
        %1286 = vmatprep.subr.bf16.mxu0 0
        %1287 = vmatpush1.bf16.msra.mxu0 0
        %1288 = vmatprep.subr.bf16.mxu0 0
        %1289 = vmatpush1.bf16.msra.mxu0 0
        %1290 = vmatprep.subr.bf16.mxu0 0
        %1291 = vmatpush1.bf16.msra.mxu0 0
        %1292 = vmatprep.subr.bf16.mxu0 0
        %1293 = vmatpush1.bf16.msra.mxu0 0
        %1294 = vmatprep.subr.bf16.mxu0 0
        %1295 = vmatpush1.bf16.msra.mxu0 0
        %1296 = vmatprep.subr.bf16.mxu0 0
        %1297 = vmatpush1.bf16.msra.mxu0 0
        %1298 = vmatprep.subr.bf16.mxu0 0
        %1299 = vmatpush1.bf16.msra.mxu0 0
        %1300 = vmatprep.mubr.bf16.mxu0 0
        %1301 = vmatmul.mubr.bf16.gmra.mrb[0].mxu0 %v1262
        %v1302 = vpop.f32.mrb[0].mxu0
        %v1303 = vadd.f32 0.0, %v1302
        %v1304 = vpop.f32.mrb[0].mxu0
        %v1305 = vpop.f32.mrb[0].mxu0
        %v1306 = vpop.f32.mrb[0].mxu0
        %1307 = vdwg.mxu0
        %v1309 = vsel %vm1212, %v1258, 0
        %v1312 = vsel %vm1264, %v1024, 0
        %1314 = vmatprep.subr.bf16.mxu0 0
        %1315 = vmatpush1.bf16.msra.mxu0 %v1312
        %1316 = vmatprep.subr.bf16.mxu0 0
        %1317 = vmatpush1.bf16.msra.mxu0 0
        %1318 = vmatprep.subr.bf16.mxu0 0
        %1319 = vmatpush1.bf16.msra.mxu0 0
        %1320 = vmatprep.subr.bf16.mxu0 0
        %1321 = vmatpush1.bf16.msra.mxu0 0
        %1322 = vmatprep.subr.bf16.mxu0 0
        %1323 = vmatpush1.bf16.msra.mxu0 0
        %1324 = vmatprep.subr.bf16.mxu0 0
        %1325 = vmatpush1.bf16.msra.mxu0 0
        %1326 = vmatprep.subr.bf16.mxu0 0
        %1327 = vmatpush1.bf16.msra.mxu0 0
        %1328 = vmatprep.subr.bf16.mxu0 0
        %1329 = vmatpush1.bf16.msra.mxu0 0
        %1330 = vmatprep.subr.bf16.mxu0 0
        %1331 = vmatpush1.bf16.msra.mxu0 0
        %1332 = vmatprep.subr.bf16.mxu0 0
        %1333 = vmatpush1.bf16.msra.mxu0 0
        %1334 = vmatprep.subr.bf16.mxu0 0
        %1335 = vmatpush1.bf16.msra.mxu0 0
        %1336 = vmatprep.subr.bf16.mxu0 0
        %1337 = vmatpush1.bf16.msra.mxu0 0
        %1338 = vmatprep.subr.bf16.mxu0 0
        %1339 = vmatpush1.bf16.msra.mxu0 0
        %1340 = vmatprep.subr.bf16.mxu0 0
        %1341 = vmatpush1.bf16.msra.mxu0 0
        %1342 = vmatprep.subr.bf16.mxu0 0
        %1343 = vmatpush1.bf16.msra.mxu0 0
        %1344 = vmatprep.subr.bf16.mxu0 0
        %1345 = vmatpush1.bf16.msra.mxu0 0
        %1346 = vmatprep.mubr.bf16.mxu0 0
        %1347 = vmatmul.mubr.bf16.gmra.mrb[0].mxu0 %v1309
        %v1348 = vpop.f32.mrb[0].mxu0
        %v1349 = vadd.f32 0.0, %v1348
        %v1350 = vpop.f32.mrb[0].mxu0
        %v1351 = vpop.f32.mrb[0].mxu0
        %v1352 = vpop.f32.mrb[0].mxu0
        %1353 = vdwg.mxu0
        %v1355 = vsel %vm1212, %v1259, 0
        %v1358 = vsel %vm1264, %v1025, 0
        %1360 = vmatprep.subr.bf16.mxu0 0
        %1361 = vmatpush1.bf16.msra.mxu0 %v1358
        %1362 = vmatprep.subr.bf16.mxu0 0
        %1363 = vmatpush1.bf16.msra.mxu0 0
        %1364 = vmatprep.subr.bf16.mxu0 0
        %1365 = vmatpush1.bf16.msra.mxu0 0
        %1366 = vmatprep.subr.bf16.mxu0 0
        %1367 = vmatpush1.bf16.msra.mxu0 0
        %1368 = vmatprep.subr.bf16.mxu0 0
        %1369 = vmatpush1.bf16.msra.mxu0 0
        %1370 = vmatprep.subr.bf16.mxu0 0
        %1371 = vmatpush1.bf16.msra.mxu0 0
        %1372 = vmatprep.subr.bf16.mxu0 0
        %1373 = vmatpush1.bf16.msra.mxu0 0
        %1374 = vmatprep.subr.bf16.mxu0 0
        %1375 = vmatpush1.bf16.msra.mxu0 0
        %1376 = vmatprep.subr.bf16.mxu0 0
        %1377 = vmatpush1.bf16.msra.mxu0 0
        %1378 = vmatprep.subr.bf16.mxu0 0
        %1379 = vmatpush1.bf16.msra.mxu0 0
        %1380 = vmatprep.subr.bf16.mxu0 0
        %1381 = vmatpush1.bf16.msra.mxu0 0
        %1382 = vmatprep.subr.bf16.mxu0 0
        %1383 = vmatpush1.bf16.msra.mxu0 0
        %1384 = vmatprep.subr.bf16.mxu0 0
        %1385 = vmatpush1.bf16.msra.mxu0 0
        %1386 = vmatprep.subr.bf16.mxu0 0
        %1387 = vmatpush1.bf16.msra.mxu0 0
        %1388 = vmatprep.subr.bf16.mxu0 0
        %1389 = vmatpush1.bf16.msra.mxu0 0
        %1390 = vmatprep.subr.bf16.mxu0 0
        %1391 = vmatpush1.bf16.msra.mxu0 0
        %1392 = vmatprep.mubr.bf16.mxu0 0
        %1393 = vmatmul.mubr.bf16.gmra.mrb[0].mxu0 %v1355
        %v1394 = vpop.f32.mrb[0].mxu0
        %v1395 = vadd.f32 0.0, %v1394
        %v1396 = vpop.f32.mrb[0].mxu0
        %v1397 = vpop.f32.mrb[0].mxu0
        %v1398 = vpop.f32.mrb[0].mxu0
        %1399 = vdwg.mxu0
        %v1401 = vsel %vm1212, %v1260, 0
        %v1404 = vsel %vm1264, %v1026, 0
        %1406 = vmatprep.subr.bf16.mxu0 0
        %1407 = vmatpush1.bf16.msra.mxu0 %v1404
        %1408 = vmatprep.subr.bf16.mxu0 0
        %1409 = vmatpush1.bf16.msra.mxu0 0
        %1410 = vmatprep.subr.bf16.mxu0 0
        %1411 = vmatpush1.bf16.msra.mxu0 0
        %1412 = vmatprep.subr.bf16.mxu0 0
        %1413 = vmatpush1.bf16.msra.mxu0 0
        %1414 = vmatprep.subr.bf16.mxu0 0
        %1415 = vmatpush1.bf16.msra.mxu0 0
        %1416 = vmatprep.subr.bf16.mxu0 0
        %1417 = vmatpush1.bf16.msra.mxu0 0
        %1418 = vmatprep.subr.bf16.mxu0 0
        %1419 = vmatpush1.bf16.msra.mxu0 0
        %1420 = vmatprep.subr.bf16.mxu0 0
        %1421 = vmatpush1.bf16.msra.mxu0 0
        %1422 = vmatprep.subr.bf16.mxu0 0
        %1423 = vmatpush1.bf16.msra.mxu0 0
        %1424 = vmatprep.subr.bf16.mxu0 0
        %1425 = vmatpush1.bf16.msra.mxu0 0
        %1426 = vmatprep.subr.bf16.mxu0 0
        %1427 = vmatpush1.bf16.msra.mxu0 0
        %1428 = vmatprep.subr.bf16.mxu0 0
        %1429 = vmatpush1.bf16.msra.mxu0 0
        %1430 = vmatprep.subr.bf16.mxu0 0
        %1431 = vmatpush1.bf16.msra.mxu0 0
        %1432 = vmatprep.subr.bf16.mxu0 0
        %1433 = vmatpush1.bf16.msra.mxu0 0
        %1434 = vmatprep.subr.bf16.mxu0 0
        %1435 = vmatpush1.bf16.msra.mxu0 0
        %1436 = vmatprep.subr.bf16.mxu0 0
        %1437 = vmatpush1.bf16.msra.mxu0 0
        %1438 = vmatprep.mubr.bf16.mxu0 0
        %1439 = vmatmul.mubr.bf16.gmra.mrb[0].mxu0 %v1401
        %v1440 = vpop.f32.mrb[0].mxu0
        %v1441 = vadd.f32 0.0, %v1440
        %v1442 = vpop.f32.mrb[0].mxu0
        %v1443 = vpop.f32.mrb[0].mxu0
        %v1444 = vpop.f32.mrb[0].mxu0
        %1445 = vdwg.mxu0
        %v1446 = vpack.c.bf16 %v1303, %v1303
        %v1447 = vpack.c.bf16 %v1349, %v1349
        %v1448 = vpack.c.bf16 %v1395, %v1395
        %v1449 = vpack.c.bf16 %v1441, %v1441
        %v1450 = vld [vmem:[%s6] sm:$0xf]
        %v1451 = vld [vmem:[%s6 + $0x4] sm:$0xf]
        %v1452 = vld [vmem:[%s6 + $0x8] sm:$0xf]
        %v1453 = vld [vmem:[%s6 + $0xc] sm:$0xf]
        %v1454 = vld [vmem:[%s6 + $0x10] sm:$0xf]
        %v1455 = vld [vmem:[%s6 + $0x14] sm:$0xf]
        %v1456 = vld [vmem:[%s6 + $0x18] sm:$0xf]
        %v1457 = vld [vmem:[%s6 + $0x1c] sm:$0xf]
        %v1460 = vunpack.c.l.b16 %v1450
        %v1461 = vunpack.c.l.b16 %v1451
        %v1462 = vpack.c.b16 %v1461, %v1460
        %v1465 = vsel %vm1027, %v1446, 0
        %1467 = vmatprep.subr.bf16.mxu0 0
        %1468 = vmatpush1.bf16.msra.mxu0 %v1462
        %1469 = vmatprep.subr.bf16.mxu0 0
        %1470 = vmatpush1.bf16.msra.mxu0 0
        %1471 = vmatprep.subr.bf16.mxu0 0
        %1472 = vmatpush1.bf16.msra.mxu0 0
        %1473 = vmatprep.subr.bf16.mxu0 0
        %1474 = vmatpush1.bf16.msra.mxu0 0
        %1475 = vmatprep.subr.bf16.mxu0 0
        %1476 = vmatpush1.bf16.msra.mxu0 0
        %1477 = vmatprep.subr.bf16.mxu0 0
        %1478 = vmatpush1.bf16.msra.mxu0 0
        %1479 = vmatprep.subr.bf16.mxu0 0
        %1480 = vmatpush1.bf16.msra.mxu0 0
        %1481 = vmatprep.subr.bf16.mxu0 0
        %1482 = vmatpush1.bf16.msra.mxu0 0
        %1483 = vmatprep.subr.bf16.mxu0 0
        %1484 = vmatpush1.bf16.msra.mxu0 0
        %1485 = vmatprep.subr.bf16.mxu0 0
        %1486 = vmatpush1.bf16.msra.mxu0 0
        %1487 = vmatprep.subr.bf16.mxu0 0
        %1488 = vmatpush1.bf16.msra.mxu0 0
        %1489 = vmatprep.subr.bf16.mxu0 0
        %1490 = vmatpush1.bf16.msra.mxu0 0
        %1491 = vmatprep.subr.bf16.mxu0 0
        %1492 = vmatpush1.bf16.msra.mxu0 0
        %1493 = vmatprep.subr.bf16.mxu0 0
        %1494 = vmatpush1.bf16.msra.mxu0 0
        %1495 = vmatprep.subr.bf16.mxu0 0
        %1496 = vmatpush1.bf16.msra.mxu0 0
        %1497 = vmatprep.subr.bf16.mxu0 0
        %1498 = vmatpush1.bf16.msra.mxu0 0
        %1499 = vmatprep.mubr.bf16.mxu0 0
        %1500 = vmatmul.mubr.bf16.gmra.mrb[0].mxu0 %v1465
        %v1501 = vpop.f32.mrb[0].mxu0
        %v1502 = vadd.f32 0.0, %v1501
        %v1503 = vpop.f32.mrb[0].mxu0
        %v1504 = vpop.f32.mrb[0].mxu0
        %v1505 = vpop.f32.mrb[0].mxu0
        %1506 = vdwg.mxu0
        %v1509 = vunpack.c.l.b16 %v1452
        %v1510 = vunpack.c.l.b16 %v1453
        %v1511 = vpack.c.b16 %v1510, %v1509
        %v1514 = vsel %vm1027, %v1447, 0
        %1516 = vmatprep.subr.bf16.mxu0 0
        %1517 = vmatpush1.bf16.msra.mxu0 %v1511
        %1518 = vmatprep.subr.bf16.mxu0 0
        %1519 = vmatpush1.bf16.msra.mxu0 0
        %1520 = vmatprep.subr.bf16.mxu0 0
        %1521 = vmatpush1.bf16.msra.mxu0 0
        %1522 = vmatprep.subr.bf16.mxu0 0
        %1523 = vmatpush1.bf16.msra.mxu0 0
        %1524 = vmatprep.subr.bf16.mxu0 0
        %1525 = vmatpush1.bf16.msra.mxu0 0
        %1526 = vmatprep.subr.bf16.mxu0 0
        %1527 = vmatpush1.bf16.msra.mxu0 0
        %1528 = vmatprep.subr.bf16.mxu0 0
        %1529 = vmatpush1.bf16.msra.mxu0 0
        %1530 = vmatprep.subr.bf16.mxu0 0
        %1531 = vmatpush1.bf16.msra.mxu0 0
        %1532 = vmatprep.subr.bf16.mxu0 0
        %1533 = vmatpush1.bf16.msra.mxu0 0
        %1534 = vmatprep.subr.bf16.mxu0 0
        %1535 = vmatpush1.bf16.msra.mxu0 0
        %1536 = vmatprep.subr.bf16.mxu0 0
        %1537 = vmatpush1.bf16.msra.mxu0 0
        %1538 = vmatprep.subr.bf16.mxu0 0
        %1539 = vmatpush1.bf16.msra.mxu0 0
        %1540 = vmatprep.subr.bf16.mxu0 0
        %1541 = vmatpush1.bf16.msra.mxu0 0
        %1542 = vmatprep.subr.bf16.mxu0 0
        %1543 = vmatpush1.bf16.msra.mxu0 0
        %1544 = vmatprep.subr.bf16.mxu0 0
        %1545 = vmatpush1.bf16.msra.mxu0 0
        %1546 = vmatprep.subr.bf16.mxu0 0
        %1547 = vmatpush1.bf16.msra.mxu0 0
        %1548 = vmatprep.mubr.bf16.mxu0 0
        %1549 = vmatmul.mubr.bf16.gmra.mrb[0].mxu0 %v1514
        %v1550 = vpop.f32.mrb[0].mxu0
        %v1551 = vadd.f32 0.0, %v1550
        %v1552 = vpop.f32.mrb[0].mxu0
        %v1553 = vpop.f32.mrb[0].mxu0
        %v1554 = vpop.f32.mrb[0].mxu0
        %1555 = vdwg.mxu0
        %v1558 = vunpack.c.l.b16 %v1454
        %v1559 = vunpack.c.l.b16 %v1455
        %v1560 = vpack.c.b16 %v1559, %v1558
        %v1563 = vsel %vm1027, %v1448, 0
        %1565 = vmatprep.subr.bf16.mxu0 0
        %1566 = vmatpush1.bf16.msra.mxu0 %v1560
        %1567 = vmatprep.subr.bf16.mxu0 0
        %1568 = vmatpush1.bf16.msra.mxu0 0
        %1569 = vmatprep.subr.bf16.mxu0 0
        %1570 = vmatpush1.bf16.msra.mxu0 0
        %1571 = vmatprep.subr.bf16.mxu0 0
        %1572 = vmatpush1.bf16.msra.mxu0 0
        %1573 = vmatprep.subr.bf16.mxu0 0
        %1574 = vmatpush1.bf16.msra.mxu0 0
        %1575 = vmatprep.subr.bf16.mxu0 0
        %1576 = vmatpush1.bf16.msra.mxu0 0
        %1577 = vmatprep.subr.bf16.mxu0 0
        %1578 = vmatpush1.bf16.msra.mxu0 0
        %1579 = vmatprep.subr.bf16.mxu0 0
        %1580 = vmatpush1.bf16.msra.mxu0 0
        %1581 = vmatprep.subr.bf16.mxu0 0
        %1582 = vmatpush1.bf16.msra.mxu0 0
        %1583 = vmatprep.subr.bf16.mxu0 0
        %1584 = vmatpush1.bf16.msra.mxu0 0
        %1585 = vmatprep.subr.bf16.mxu0 0
        %1586 = vmatpush1.bf16.msra.mxu0 0
        %1587 = vmatprep.subr.bf16.mxu0 0
        %1588 = vmatpush1.bf16.msra.mxu0 0
        %1589 = vmatprep.subr.bf16.mxu0 0
        %1590 = vmatpush1.bf16.msra.mxu0 0
        %1591 = vmatprep.subr.bf16.mxu0 0
        %1592 = vmatpush1.bf16.msra.mxu0 0
        %1593 = vmatprep.subr.bf16.mxu0 0
        %1594 = vmatpush1.bf16.msra.mxu0 0
        %1595 = vmatprep.subr.bf16.mxu0 0
        %1596 = vmatpush1.bf16.msra.mxu0 0
        %1597 = vmatprep.mubr.bf16.mxu0 0
        %1598 = vmatmul.mubr.bf16.gmra.mrb[0].mxu0 %v1563
        %v1599 = vpop.f32.mrb[0].mxu0
        %v1600 = vadd.f32 0.0, %v1599
        %v1601 = vpop.f32.mrb[0].mxu0
        %v1602 = vpop.f32.mrb[0].mxu0
        %v1603 = vpop.f32.mrb[0].mxu0
        %1604 = vdwg.mxu0
        %v1607 = vunpack.c.l.b16 %v1456
        %v1608 = vunpack.c.l.b16 %v1457
        %v1609 = vpack.c.b16 %v1608, %v1607
        %v1612 = vsel %vm1027, %v1449, 0
        %1614 = vmatprep.subr.bf16.mxu0 0
        %1615 = vmatpush1.bf16.msra.mxu0 %v1609
        %1616 = vmatprep.subr.bf16.mxu0 0
        %1617 = vmatpush1.bf16.msra.mxu0 0
        %1618 = vmatprep.subr.bf16.mxu0 0
        %1619 = vmatpush1.bf16.msra.mxu0 0
        %1620 = vmatprep.subr.bf16.mxu0 0
        %1621 = vmatpush1.bf16.msra.mxu0 0
        %1622 = vmatprep.subr.bf16.mxu0 0
        %1623 = vmatpush1.bf16.msra.mxu0 0
        %1624 = vmatprep.subr.bf16.mxu0 0
        %1625 = vmatpush1.bf16.msra.mxu0 0
        %1626 = vmatprep.subr.bf16.mxu0 0
        %1627 = vmatpush1.bf16.msra.mxu0 0
        %1628 = vmatprep.subr.bf16.mxu0 0
        %1629 = vmatpush1.bf16.msra.mxu0 0
        %1630 = vmatprep.subr.bf16.mxu0 0
        %1631 = vmatpush1.bf16.msra.mxu0 0
        %1632 = vmatprep.subr.bf16.mxu0 0
        %1633 = vmatpush1.bf16.msra.mxu0 0
        %1634 = vmatprep.subr.bf16.mxu0 0
        %1635 = vmatpush1.bf16.msra.mxu0 0
        %1636 = vmatprep.subr.bf16.mxu0 0
        %1637 = vmatpush1.bf16.msra.mxu0 0
        %1638 = vmatprep.subr.bf16.mxu0 0
        %1639 = vmatpush1.bf16.msra.mxu0 0
        %1640 = vmatprep.subr.bf16.mxu0 0
        %1641 = vmatpush1.bf16.msra.mxu0 0
        %1642 = vmatprep.subr.bf16.mxu0 0
        %1643 = vmatpush1.bf16.msra.mxu0 0
        %1644 = vmatprep.subr.bf16.mxu0 0
        %1645 = vmatpush1.bf16.msra.mxu0 0
        %1646 = vmatprep.mubr.bf16.mxu0 0
        %1647 = vmatmul.mubr.bf16.gmra.mrb[0].mxu0 %v1612
        %v1648 = vpop.f32.mrb[0].mxu0
        %v1649 = vadd.f32 0.0, %v1648
        %v1650 = vpop.f32.mrb[0].mxu0
        %v1651 = vpop.f32.mrb[0].mxu0
        %v1652 = vpop.f32.mrb[0].mxu0
        %1653 = vdwg.mxu0
        %v1654 = vsel %vm306, %v1502, 0.0
        %v1655 = vsel %vm306, %v1551, 0.0
        %v1656 = vadd.f32 %v1654, %v1655
        %v1657 = vsel %vm306, %v1600, 0.0
        %v1658 = vadd.f32 %v1656, %v1657
        %v1659 = vsel %vm306, %v1649, 0.0
        %v1660 = vadd.f32 %v1658, %v1659
        %v1662 = vlaneseq
        %v1663 = vshrl.u32 %v1662, 7
        %v1664 = vsub.s32 0, %v1663
        %v1665 = vrot.slane %v305, %v1664
        %v1667 = vadd.f32 %v1660, %v1665
        %1668 = vst.msk [vmem:[%s296] sm:$0xff] %vm306, %v1667
        %s1669 = sand.u32 %s203, 1
        %s1670 = scalar_lea.sflag [#allocation3], %s1669
        %s1671 = sand.u32 %s203, 1
        %s1672 = smul.addr %s1671, 8
        %s1673 = scalar_lea.vmem [#allocation2], %s1672
        // Predicated region
        $region53: #{tpu_custom_call.1} parent=51 // pred_check
          %p1674 = pneg %p213
        $region54: #{tpu_custom_call.1} parent=51 // pred_check_branch
          %1676 = sbr.rel (%p1674) target = $region56
        $region55: #{tpu_custom_call.1} parent=51 // pred_region
          %s1678 = ssub.s32 128, 128
          %1679 = vsyncadd %s1670, %s1678
          %s1680 = smul.addr %s22, 128
          %s1681 = scalar_lea.hbm %s8, %s1680
          %s1683 = sshll.u32 %s1673, 4
          %s1684 = int_to_ptr.vmem [resolvable:$true] %s1683
          %1686 = dma.vmem_to_hbm [thread:$0]  %s1684, 128, %s1681, %s1670
        $region56: #{tpu_custom_call.1} parent=51 // pred_fallthru
          _
      $region52: #{tpu_custom_call.1} parent=5 // pred_fallthru
        _
      %p1687 = scmp.le.s32.totalorder 2, %s17
      // Predicated region
      $region57: #{tpu_custom_call.1} parent=5 // pred_check
        %p1688 = pneg %p1687
      $region58: #{tpu_custom_call.1} parent=5 // pred_check_branch
        %1690 = sbr.rel (%p1688) target = $region60
      $region59: #{tpu_custom_call.1} parent=5 // pred_region
        %s1691 = ssub.s32 %s17, 2
        // Predicated region
        $region61: #{tpu_custom_call.1} parent=59 // pred_check
          %p1692 = pneg %p219
        $region62: #{tpu_custom_call.1} parent=59 // pred_check_branch
          %1694 = sbr.rel (%p1692) target = $region64
        $region63: #{tpu_custom_call.1} parent=59 // pred_region
          %s1695 = sand.u32 %s204, 1
          %s1696 = scalar_lea.sflag [#allocation3], %s1695
          %s1697 = sand.u32 %s204, 1
          %s1698 = smul.addr %s1697, 8
          %s1699 = scalar_lea.vmem [#allocation2], %s1698
          %1700 = dma.done %s1696, 128
        $region64: #{tpu_custom_call.1} parent=59 // pred_fallthru
          _
      $region60: #{tpu_custom_call.1} parent=5 // pred_fallthru
        _
    $region6: #{tpu_custom_call.1} parent=1 // loop_footer
      %s21 = sadd.s32 1, %s17
    $region7: #{tpu_custom_call.1} parent=1 // loop_footer_branch
      %16 = sbr.rel target = $region3
    $region8: #{tpu_custom_call.1} parent=1 // loop_exit
      _
    %1701 = vsyncpa [#allocation3], 1
    %s1702 = scalar_lea.sflag [#allocation3], 1
    %1703 = vsyncpa %s1702, 1

</llo_original>
